<compile_context>
chip_gen: v7x
topology: tpu7x:2x2x1
jax: 0.10.0
libtpu: 0.0.40
codegen_flags: <defaults>
</compile_context>

<pallas_src>
import functools

import jax
import jax.numpy as jnp
from jax import lax
from jax.experimental import pallas as pl
from jax.experimental.pallas import tpu as pltpu

NEG_SLOPE = 0.2      # GATConv default negative_slope
NEG_INF = -1e30
FPAD = 128           # lane-dense padded feature width (all layer widths <= 128 here)


# --------------------------------------------------------------------------
# Fused kernel: grid axis = layer index.  Activations carried in VMEM scratch.
# --------------------------------------------------------------------------
def fused_gat_kernel(x0_ref, mask_ref, w_ref, ws_ref, b_ref, member_ref,
                     out_ref, x_scr, *, num_classes, num_graphs, nodes_per_graph):
    layer = pl.program_id(0)
    n_layers = pl.num_programs(0)

    # Load the (padded, bf16) input features into the resident activation buffer once.
    @pl.when(layer == 0)
    def _():
        x_scr[...] = x0_ref[...]

    x = x_scr[...]                                                  # [N, FPAD] bf16
    w = w_ref[0]                                                    # [FPAD, FPAD] bf16
    # One MXU pass: transformed features; column FPAD-1 holds s_dst = h @ a_dst^T
    # (a_dst was folded into W on the host).
    h = jnp.dot(x, w, preferred_element_type=jnp.float32)           # [N, FPAD] f32
    s_dst = h[:, FPAD - 1:FPAD]                                     # [N, 1]

    # src scores as a lane-dense [1, N] row (contract the feature axis directly);
    # the VPU broadcast below replaces the old ones ⊗ s_src outer product.
    s_src_row = lax.dot_general(ws_ref[0], x, (((1,), (1,)), ((), ())),
                                preferred_element_type=jnp.float32)  # [1, N]

    # e[i, j] = leaky_relu(s_dst[i] + s_src[j])  for edge j -> i
    e = s_dst + s_src_row                                           # [N, N]
    e = jnp.maximum(e, NEG_SLOPE * e)                               # leaky relu
    e = e + mask_ref[...]                                           # additive mask (0 / -1e30)

    # softmax over incoming edges j (per target row i); masked entries exp -> 0.
    m = jnp.max(e, axis=-1, keepdims=True)
    p = jnp.exp(e - m)                                              # [N, N]
    denom = jnp.sum(p, axis=-1, keepdims=True)                      # [N, 1] (>=1: self loops)

    # FLOP-dominant aggregation in bf16 with f32 accumulate; normalize afterwards
    # with an exact reciprocal on the tiny [N,1] denominator.
    agg = jnp.dot(p.astype(jnp.bfloat16), h.astype(jnp.bfloat16),
                  preferred_element_type=jnp.float32)               # [N, FPAD]
    h_out = agg * pl.reciprocal(denom) + b_ref[0]                   # [N, FPAD]
    # NOTE: column FPAD-1 of h_out is "garbage" (aggregated s_dst); it is killed
    # downstream because W/ws rows beyond each layer's fan-in are zero and the
    # pooling head only reads [:, :num_classes].

    # Hidden layers: SiLU (x * sigmoid(x)) and carry to next grid step (bf16).
    @pl.when(layer < n_layers - 1)
    def _():
        x_scr[...] = (h_out * jax.nn.sigmoid(h_out)).astype(x_scr.dtype)

    # Last layer: pooling head + log_softmax, written once.
    @pl.when(layer == n_layers - 1)
    def _():
        c = num_classes
        # global max pool: graphs are contiguous equal-size node blocks, so the
        # per-graph max is one reshape + one sublane reduce (no Python loop).
        h3 = h_out.reshape(num_graphs, nodes_per_graph, FPAD)
        gmp = jnp.max(h3, axis=1)[:, :c]                            # [G, C]
        # global mean pool: membership matrix pre-scaled by 1/counts on host.
        gap = jnp.dot(member_ref[...], h_out,
                      preferred_element_type=jnp.float32)[:, :c]    # [G, C]

        z = jnp.concatenate([gmp, gap], axis=1)                     # [G, 2C]
        zmax = jnp.max(z, axis=1, keepdims=True)
        zs = z - zmax
        lse = jnp.log(jnp.sum(jnp.exp(zs), axis=1, keepdims=True))
        out_ref[...] = (zs - lse).astype(out_ref.dtype)


# --------------------------------------------------------------------------
# Host wrapper: pad/fold/stack parameters and launch the fused kernel.
# --------------------------------------------------------------------------
def gat_forward_fused(x, mask, member_scaled, params, num_classes, nodes_per_graph):
    n, f_in = x.shape
    g = member_scaled.shape[0]
    n_layers = len(params)

    w_all, ws_all, b_all = [], [], []
    for (w, a_src, a_dst, b) in params:
        fi, fo = w.shape
        assert fi <= FPAD and fo < FPAD   # column FPAD-1 reserved for folded dst scores
        w_pad = jnp.zeros((FPAD, FPAD), jnp.float32)
        w_pad = w_pad.at[:fi, :fo].set(w)
        w_pad = w_pad.at[:fi, FPAD - 1].set((w @ a_dst.T)[:, 0])     # fold a_dst into W
        w_all.append(w_pad.astype(jnp.bfloat16))
        ws_row = jnp.zeros((1, FPAD), jnp.float32).at[:, :fi].set((w @ a_src.T).T)
        ws_all.append(ws_row.astype(jnp.bfloat16))
        b_all.append(jnp.zeros((1, FPAD), jnp.float32).at[:, :fo].set(b))
    w_all = jnp.stack(w_all)                    # [L, FPAD, FPAD] bf16
    ws_all = jnp.stack(ws_all)                  # [L, 1, FPAD]    bf16
    b_all = jnp.stack(b_all)                    # [L, 1, FPAD]    f32

    x_pad = jnp.zeros((n, FPAD), jnp.bfloat16).at[:, :f_in].set(x.astype(jnp.bfloat16))

    kernel = functools.partial(fused_gat_kernel, num_classes=num_classes,
                               num_graphs=g, nodes_per_graph=nodes_per_graph)
    return pl.pallas_call(
        kernel,
        out_shape=jax.ShapeDtypeStruct((g, 2 * num_classes), jnp.float32),
        grid=(n_layers,),
        in_specs=[
            pl.BlockSpec((n, FPAD), lambda l: (0, 0)),           # x0 (loaded once)
            pl.BlockSpec((n, n), lambda l: (0, 0)),              # additive mask (loaded once)
            pl.BlockSpec((1, FPAD, FPAD), lambda l: (l, 0, 0)),  # W (+ folded a_dst) per layer
            pl.BlockSpec((1, 1, FPAD), lambda l: (l, 0, 0)),     # ws row per layer
            pl.BlockSpec((1, 1, FPAD), lambda l: (l, 0, 0)),     # bias per layer
            pl.BlockSpec((g, n), lambda l: (0, 0)),              # member / counts (once)
        ],
        out_specs=pl.BlockSpec((g, 2 * num_classes), lambda l: (0, 0)),
        scratch_shapes=[pltpu.VMEM((n, FPAD), jnp.bfloat16)],     # resident activations
        compiler_params=pltpu.CompilerParams(
            dimension_semantics=("arbitrary",),                   # layers are sequential
            # raised from 32 MiB; 48 MiB is safe on v5e/v6e (128 MiB) and v7x (64 MiB)
            vmem_limit_bytes=48 * 1024 * 1024),
    )(x_pad, mask, w_all, ws_all, b_all, member_scaled)


# --------------------------------------------------------------------------
# Pure-JAX reference (true f32 semantics) for validation.
# --------------------------------------------------------------------------
def gat_reference(x, adj, params, member, counts):
    hp = jax.lax.Precision.HIGHEST
    n_layers = len(params)
    h_in = x
    for idx, (w, a_src, a_dst, b) in enumerate(params):
        h = jnp.dot(h_in, w, precision=hp)
        s_src = jnp.dot(h, a_src.T, precision=hp)            # [N, 1]
        s_dst = jnp.dot(h, a_dst.T, precision=hp)            # [N, 1]
        e = s_dst + s_src.T
        e = jnp.where(e > 0, e, NEG_SLOPE * e)
        e = jnp.where(adj > 0, e, -jnp.inf)
        alpha = jax.nn.softmax(e, axis=-1)
        out = jnp.dot(alpha, h, precision=hp) + b
        if idx < n_layers - 1:
            out = out * jax.nn.sigmoid(out)
        h_in = out
    gmp = jnp.max(jnp.where(member[:, :, None] > 0, h_in[None, :, :], -jnp.inf), axis=1)
    gap = jnp.dot(member, h_in, precision=hp) / counts
    z = jnp.concatenate([gmp, gap], axis=1)
    return jax.nn.log_softmax(z, axis=1)


# --------------------------------------------------------------------------
# Parameter init (deterministic, xavier-uniform like GATConv / nn.init)
# --------------------------------------------------------------------------
def init_gatconv_params(key, in_dim, out_dim):
    k1, k2, k3 = jax.random.split(key, 3)
    lim_w = (6.0 / (in_dim + out_dim)) ** 0.5
    w = jax.random.uniform(k1, (in_dim, out_dim), jnp.float32, -lim_w, lim_w)
    lim_a = (6.0 / (1 + out_dim)) ** 0.5
    att_src = jax.random.uniform(k2, (1, out_dim), jnp.float32, -lim_a, lim_a)
    att_dst = jax.random.uniform(k3, (1, out_dim), jnp.float32, -lim_a, lim_a)
    bias = jnp.zeros((1, out_dim), jnp.float32)
    return (w, att_src, att_dst, bias)


# --------------------------------------------------------------------------
# Main
# --------------------------------------------------------------------------
if __name__ == "__main__":
    key = jax.random.PRNGKey(0)

    # Synthetic graph batch sized so N is a multiple of 256 (MXU-dense on v6e/v7x):
    # G=8 graphs x 32 nodes -> N=256, num_features=8, width=[16, 16], num_classes=4.
    num_features = 8
    width = [16, 16]
    num_classes = 4
    nodes_per_graph = 32
    num_graphs = 8
    N = nodes_per_graph * num_graphs

    kx, kp = jax.random.split(key)
    x = jax.random.normal(kx, (N, num_features), jnp.float32)

    # edge_index: ring within each graph (both directions)
    src_list, dst_list = [], []
    for gi in range(num_graphs):
        base = gi * nodes_per_graph
        for j in range(nodes_per_graph):
            a = base + j
            b = base + (j + 1) % nodes_per_graph
            src_list += [a, b]
            dst_list += [b, a]

    # dense adjacency with self-loops: adj[dst, src] = 1
    adj = jnp.zeros((N, N), jnp.float32)
    adj = adj.at[jnp.array(dst_list), jnp.array(src_list)].set(1.0)
    adj = adj.at[jnp.arange(N), jnp.arange(N)].set(1.0)
    # every row must have >= 1 incoming edge (self loops) or the softmax denom is 0
    assert bool(jnp.all(jnp.sum(adj, axis=1) > 0))
    # additive mask used in-kernel (f32; avoids bf16 compares on v5e)
    mask = jnp.where(adj > 0, 0.0, NEG_INF).astype(jnp.float32)

    # batch vector -> one-hot membership; counts folded into the mean-pool matrix
    batch = jnp.repeat(jnp.arange(num_graphs), nodes_per_graph)
    member = jax.nn.one_hot(batch, num_graphs, dtype=jnp.float32).T   # [G, N]
    counts = jnp.sum(member, axis=1, keepdims=True)                   # [G, 1]
    member_scaled = member / counts                                   # [G, N]

    # layer widths: features -> width[0] -> width[1] -> num_classes
    dims = [num_features] + width + [num_classes]
    params = []
    keys = jax.random.split(kp, len(dims) - 1)
    for i in range(len(dims) - 1):
        params.append(init_gatconv_params(keys[i], dims[i], dims[i + 1]))

    out = gat_forward_fused(x, mask, member_scaled, params, num_classes, nodes_per_graph)
    out = jax.block_until_ready(out)

    assert out.shape == (num_graphs, 2 * num_classes), out.shape
    assert bool(jnp.all(jnp.isfinite(out)))
    # rows of log_softmax should sum (in prob space) to 1
    assert bool(jnp.allclose(jnp.sum(jnp.exp(out), axis=1), 1.0, atol=1e-4))

    # validate against the pure f32 reference (tolerance covers the bf16
    # weights/activations and bf16 aggregation used in-kernel)
    ref = gat_reference(x, adj, params, member, counts)
    assert bool(jnp.allclose(out, ref, atol=1e-1)), float(jnp.max(jnp.abs(out - ref)))

    print("KERNEL_OK")
</pallas_src>

<mosaic_0001>
module attributes {stable_mosaic.version = 11 : i64} {
  func.func @fused_gat_kernel(%arg0: i32, %arg1: memref<256x128xbf16, #tpu.memory_space<vmem>>, %arg2: memref<256x256xf32, #tpu.memory_space<vmem>>, %arg3: memref<1x128x128xbf16, #tpu.memory_space<vmem>>, %arg4: memref<1x1x128xbf16, #tpu.memory_space<vmem>>, %arg5: memref<1x1x128xf32, #tpu.memory_space<vmem>>, %arg6: memref<8x256xf32, #tpu.memory_space<vmem>>, %arg7: memref<8x8xf32, #tpu.memory_space<vmem>>, %arg8: memref<256x128xbf16, #tpu.memory_space<vmem>>) attributes {dimension_semantics = [#tpu.dimension_semantics<arbitrary>], iteration_bounds = array<i64: 3>, scalar_prefetch = 0 : i64, scratch_operands = 1 : i64, tpu.core_type = #tpu.core_type<tc>, window_params = [{pipeline_mode = #tpu.pipeline_mode<synchronous>, transform_indices = @transform_0, window_bounds = array<i64: 256, 128>}, {pipeline_mode = #tpu.pipeline_mode<synchronous>, transform_indices = @transform_1, window_bounds = array<i64: 256, 256>}, {transform_indices = @transform_2, window_bounds = array<i64: 1, 128, 128>}, {transform_indices = @transform_3, window_bounds = array<i64: 1, 1, 128>}, {transform_indices = @transform_4, window_bounds = array<i64: 1, 1, 128>}, {pipeline_mode = #tpu.pipeline_mode<synchronous>, transform_indices = @transform_5, window_bounds = array<i64: 8, 256>}, {pipeline_mode = #tpu.pipeline_mode<synchronous>, transform_indices = @transform_6, window_bounds = array<i64: 8, 8>}]} {
    %c0_i32 = arith.constant 0 : i32
    %0 = arith.cmpi eq, %arg0, %c0_i32 : i32
    %1 = arith.extui %0 : i1 to i32
    %c0_i32_0 = arith.constant 0 : i32
    %2 = arith.cmpi ne, %1, %c0_i32_0 : i32
    scf.if %2 {
      %c0_21 = arith.constant 0 : index
      %c0_22 = arith.constant 0 : index
      %42 = vector.load %arg1[%c0_21, %c0_22] : memref<256x128xbf16, #tpu.memory_space<vmem>>, vector<256x128xbf16>
      %c0_23 = arith.constant 0 : index
      %c0_24 = arith.constant 0 : index
      %43 = vector.load %arg8[%c0_23, %c0_24] : memref<256x128xbf16, #tpu.memory_space<vmem>>, vector<256x128xbf16>
      tpu.vector_store %arg8[%c0_23, %c0_24], %42 {strides = array<i32>} : memref<256x128xbf16, #tpu.memory_space<vmem>>, vector<256x128xbf16>,
    } else {
    }
    %c0 = arith.constant 0 : index
    %c0_1 = arith.constant 0 : index
    %3 = vector.load %arg8[%c0, %c0_1] : memref<256x128xbf16, #tpu.memory_space<vmem>>, vector<256x128xbf16>
    %c0_2 = arith.constant 0 : index
    %c0_3 = arith.constant 0 : index
    %c0_4 = arith.constant 0 : index
    %4 = vector.load %arg3[%c0_2, %c0_3, %c0_4] : memref<1x128x128xbf16, #tpu.memory_space<vmem>>, vector<1x128x128xbf16>
    %5 = vector.shape_cast %4 : vector<1x128x128xbf16> to vector<128x128xbf16>
    %cst = arith.constant dense<0.000000e+00> : vector<256x128xf32>
    %6 = tpu.matmul %3, %5, %cst {dimension_numbers = #tpu.dot_dimension_numbers<[1], [0], [0], [1], [0, 0, 1, 1], [], []>} : vector<256x128xbf16>, vector<128x128xbf16>, vector<256x128xf32> -> vector<256x128xf32>
    %7 = vector.extract_strided_slice %6 {offsets = [0, 127], sizes = [256, 1], strides = [1, 1]} : vector<256x128xf32> to vector<256x1xf32>
    %c0_5 = arith.constant 0 : index
    %c0_6 = arith.constant 0 : index
    %c0_7 = arith.constant 0 : index
    %8 = vector.load %arg4[%c0_5, %c0_6, %c0_7] : memref<1x1x128xbf16, #tpu.memory_space<vmem>>, vector<1x1x128xbf16>
    %9 = vector.shape_cast %8 : vector<1x1x128xbf16> to vector<1x128xbf16>
    %cst_8 = arith.constant dense<0.000000e+00> : vector<1x256xf32>
    %10 = tpu.matmul %9, %3, %cst_8 {dimension_numbers = #tpu.dot_dimension_numbers<[1], [1], [0], [0], [0, 0, 1, 0], [], []>} : vector<1x128xbf16>, vector<256x128xbf16>, vector<1x256xf32> -> vector<1x256xf32>
    %11 = vector.broadcast %7 : vector<256x1xf32> to vector<256x256xf32>
    %12 = vector.broadcast %10 : vector<1x256xf32> to vector<256x256xf32>
    %13 = arith.addf %11, %12 : vector<256x256xf32>
    %cst_9 = arith.constant 2.000000e-01 : f32
    %14 = vector.broadcast %cst_9 : f32 to vector<256x256xf32>
    %15 = arith.mulf %14, %13 : vector<256x256xf32>
    %16 = arith.maximumf %13, %15 : vector<256x256xf32>
    %c0_10 = arith.constant 0 : index
    %c0_11 = arith.constant 0 : index
    %17 = vector.load %arg2[%c0_10, %c0_11] : memref<256x256xf32, #tpu.memory_space<vmem>>, vector<256x256xf32>
    %18 = arith.addf %16, %17 : vector<256x256xf32>
    %cst_12 = arith.constant dense<0xFF800000> : vector<256xf32>
    %19 = vector.multi_reduction <maximumf>, %18, %cst_12 [1] : vector<256x256xf32> to vector<256xf32>
    %20 = vector.shape_cast %19 : vector<256xf32> to vector<256x1xf32>
    %21 = vector.broadcast %20 : vector<256x1xf32> to vector<256x256xf32>
    %22 = arith.subf %18, %21 : vector<256x256xf32>
    %23 = math.exp %22 : vector<256x256xf32>
    %cst_13 = arith.constant dense<0.000000e+00> : vector<256xf32>
    %24 = vector.multi_reduction <add>, %23, %cst_13 [1] : vector<256x256xf32> to vector<256xf32>
    %25 = vector.shape_cast %24 : vector<256xf32> to vector<256x1xf32>
    %26 = arith.truncf %23 : vector<256x256xf32> to vector<256x256xbf16>
    %27 = arith.truncf %6 : vector<256x128xf32> to vector<256x128xbf16>
    %cst_14 = arith.constant dense<0.000000e+00> : vector<256x128xf32>
    %28 = tpu.matmul %26, %27, %cst_14 {dimension_numbers = #tpu.dot_dimension_numbers<[1], [0], [0], [1], [0, 0, 1, 1], [], []>} : vector<256x256xbf16>, vector<256x128xbf16>, vector<256x128xf32> -> vector<256x128xf32>
    %29 = tpu.reciprocal %25 : vector<256x1xf32> -> vector<256x1xf32>
    %30 = vector.broadcast %29 : vector<256x1xf32> to vector<256x128xf32>
    %31 = arith.mulf %28, %30 : vector<256x128xf32>
    %c0_15 = arith.constant 0 : index
    %c0_16 = arith.constant 0 : index
    %c0_17 = arith.constant 0 : index
    %32 = vector.load %arg5[%c0_15, %c0_16, %c0_17] : memref<1x1x128xf32, #tpu.memory_space<vmem>>, vector<1x1x128xf32>
    %33 = vector.shape_cast %32 : vector<1x1x128xf32> to vector<1x128xf32>
    %34 = vector.broadcast %33 : vector<1x128xf32> to vector<256x128xf32>
    %35 = arith.addf %31, %34 : vector<256x128xf32>
    %c2_i32 = arith.constant 2 : i32
    %36 = arith.cmpi slt, %arg0, %c2_i32 : i32
    %37 = arith.extui %36 : i1 to i32
    %c0_i32_18 = arith.constant 0 : i32
    %38 = arith.cmpi ne, %37, %c0_i32_18 : i32
    scf.if %38 {
      %42 = arith.negf %35 : vector<256x128xf32>
      %43 = math.exp %42 : vector<256x128xf32>
      %cst_21 = arith.constant 1.000000e+00 : f32
      %44 = vector.broadcast %cst_21 : f32 to vector<256x128xf32>
      %45 = arith.addf %44, %43 : vector<256x128xf32>
      %46 = arith.divf %44, %45 : vector<256x128xf32>
      %47 = arith.mulf %35, %46 : vector<256x128xf32>
      %48 = arith.truncf %47 : vector<256x128xf32> to vector<256x128xbf16>
      %c0_22 = arith.constant 0 : index
      %c0_23 = arith.constant 0 : index
      %49 = vector.load %arg8[%c0_22, %c0_23] : memref<256x128xbf16, #tpu.memory_space<vmem>>, vector<256x128xbf16>
      tpu.vector_store %arg8[%c0_22, %c0_23], %48 {strides = array<i32>} : memref<256x128xbf16, #tpu.memory_space<vmem>>, vector<256x128xbf16>,
    } else {
    }
    %c2_i32_19 = arith.constant 2 : i32
    %39 = arith.cmpi eq, %arg0, %c2_i32_19 : i32
    %40 = arith.extui %39 : i1 to i32
    %c0_i32_20 = arith.constant 0 : i32
    %41 = arith.cmpi ne, %40, %c0_i32_20 : i32
    scf.if %41 {
      %42 = vector.shape_cast %35 : vector<256x128xf32> to vector<8x32x128xf32>
      %cst_21 = arith.constant dense<0xFF800000> : vector<8x128xf32>
      %43 = vector.multi_reduction <maximumf>, %42, %cst_21 [1] : vector<8x32x128xf32> to vector<8x128xf32>
      %44 = vector.extract_strided_slice %43 {offsets = [0, 0], sizes = [8, 4], strides = [1, 1]} : vector<8x128xf32> to vector<8x4xf32>
      %c0_22 = arith.constant 0 : index
      %c0_23 = arith.constant 0 : index
      %45 = vector.load %arg6[%c0_22, %c0_23] : memref<8x256xf32, #tpu.memory_space<vmem>>, vector<8x256xf32>
      %cst_24 = arith.constant dense<0.000000e+00> : vector<8x128xf32>
      %46 = tpu.matmul %45, %35, %cst_24 {dimension_numbers = #tpu.dot_dimension_numbers<[1], [0], [0], [1], [0, 0, 1, 1], [], []>} : vector<8x256xf32>, vector<256x128xf32>, vector<8x128xf32> -> vector<8x128xf32>
      %47 = vector.extract_strided_slice %46 {offsets = [0, 0], sizes = [8, 4], strides = [1, 1]} : vector<8x128xf32> to vector<8x4xf32>
      %48 = tpu.concatenate %44, %47 in 1 : vector<8x4xf32>, vector<8x4xf32> -> vector<8x8xf32>
      %cst_25 = arith.constant dense<0xFF800000> : vector<8xf32>
      %49 = vector.multi_reduction <maximumf>, %48, %cst_25 [1] : vector<8x8xf32> to vector<8xf32>
      %50 = vector.shape_cast %49 : vector<8xf32> to vector<8x1xf32>
      %51 = vector.broadcast %50 : vector<8x1xf32> to vector<8x8xf32>
      %52 = arith.subf %48, %51 : vector<8x8xf32>
      %53 = math.exp %52 : vector<8x8xf32>
      %cst_26 = arith.constant dense<0.000000e+00> : vector<8xf32>
      %54 = vector.multi_reduction <add>, %53, %cst_26 [1] : vector<8x8xf32> to vector<8xf32>
      %55 = vector.shape_cast %54 : vector<8xf32> to vector<8x1xf32>
      %56 = math.log %55 : vector<8x1xf32>
      %57 = vector.broadcast %56 : vector<8x1xf32> to vector<8x8xf32>
      %58 = arith.subf %52, %57 : vector<8x8xf32>
      %c0_27 = arith.constant 0 : index
      %c0_28 = arith.constant 0 : index
      %59 = vector.load %arg7[%c0_27, %c0_28] : memref<8x8xf32, #tpu.memory_space<vmem>>, vector<8x8xf32>
      tpu.vector_store %arg7[%c0_27, %c0_28], %58 {strides = array<i32>} : memref<8x8xf32, #tpu.memory_space<vmem>>, vector<8x8xf32>,
    } else {
    }
    return
  }
  func.func @transform_0(%arg0: i32) -> (i32, i32) {
    %c0_i32 = arith.constant 0 : i32
    %c0_i32_0 = arith.constant 0 : i32
    %c0_i32_1 = arith.constant 0 : i32
    return %c0_i32, %c0_i32_0 : i32, i32
  }
  func.func @transform_1(%arg0: i32) -> (i32, i32) {
    %c0_i32 = arith.constant 0 : i32
    %c0_i32_0 = arith.constant 0 : i32
    %c0_i32_1 = arith.constant 0 : i32
    return %c0_i32, %c0_i32_0 : i32, i32
  }
  func.func @transform_2(%arg0: i32) -> (i32, i32, i32) {
    %c0_i32 = arith.constant 0 : i32
    %c0_i32_0 = arith.constant 0 : i32
    %c0_i32_1 = arith.constant 0 : i32
    return %arg0, %c0_i32, %c0_i32_0 : i32, i32, i32
  }
  func.func @transform_3(%arg0: i32) -> (i32, i32, i32) {
    %c0_i32 = arith.constant 0 : i32
    %c0_i32_0 = arith.constant 0 : i32
    %c0_i32_1 = arith.constant 0 : i32
    return %arg0, %c0_i32, %c0_i32_0 : i32, i32, i32
  }
  func.func @transform_4(%arg0: i32) -> (i32, i32, i32) {
    %c0_i32 = arith.constant 0 : i32
    %c0_i32_0 = arith.constant 0 : i32
    %c0_i32_1 = arith.constant 0 : i32
    return %arg0, %c0_i32, %c0_i32_0 : i32, i32, i32
  }
  func.func @transform_5(%arg0: i32) -> (i32, i32) {
    %c0_i32 = arith.constant 0 : i32
    %c0_i32_0 = arith.constant 0 : i32
    %c0_i32_1 = arith.constant 0 : i32
    return %c0_i32, %c0_i32_0 : i32, i32
  }
  func.func @transform_6(%arg0: i32) -> (i32, i32) {
    %c0_i32 = arith.constant 0 : i32
    %c0_i32_0 = arith.constant 0 : i32
    %c0_i32_1 = arith.constant 0 : i32
    return %c0_i32, %c0_i32_0 : i32, i32
  }
}

</mosaic_0001>

<llo_original>
// kernel: tpu_custom_call.1
$region0: #{tpu_custom_call.1}
  #allocation0 [shape = 'u32[]', space=smem, size = 0x4, offset = 0x4, fixed_abs, tag = 'smem constant byte address 0x4 - core index']
  #allocation1 [shape = 'u32[144,128]{1,0:T(1,128)}', space=vmem, size = 0x12000, scoped, tag = 'internal scratch']
  #allocation2 [shape = 'bf16[256,128]{1,0:T(16,128)(2,1)}', space=vmem, size = 0x10000, scoped, tag = 'scratch operand']
  %s0 = inlined_call_operand.hbm [shape: bf16[256,128], index: 0, kind: input, shape index: {}]
  %s1 = inlined_call_operand.hbm [shape: f32[256,256], index: 1, kind: input, shape index: {}]
  %s2 = inlined_call_operand.hbm [shape: bf16[3,128,128], index: 2, kind: input, shape index: {}]
  %s3 = inlined_call_operand.vmem [shape: bf16[3,1,128], index: 3, kind: input, shape index: {}]
  %s4 = inlined_call_operand.vmem [shape: f32[3,1,128], index: 4, kind: input, shape index: {}]
  %s5 = inlined_call_operand.vmem [shape: f32[8,256], index: 5, kind: input, shape index: {}]
  %s6 = inlined_call_operand.hbm [shape: f32[8,8], index: 6, kind: output, shape index: {}]
  %s7 = sld [smem:[#allocation0]]
  $region81: #{tpu_custom_call.1} parent=0
    _
  %s9 = ssub.s32 1, %s7
  %s10 = scalar_select 0, %s9, %s7
  $region1: #{tpu_custom_call.1} parent=0
    #allocation3 [shape = 'u8[65536]{0}', space=vmem, size = 0x10000, scoped, tag = 'input window, operand 0, single buffered']
    #allocation4 [shape = 's32[2]{0}', space=sflag, size = 0x8, scoped, tag = 'scoped memory for tpu_custom_call.1']
    #allocation5 [shape = 's32[2]{0}', space=sflag, size = 0x8, scoped, tag = 'scoped memory for tpu_custom_call.1']
    #allocation6 [shape = 'u8[262144]{0}', space=vmem, size = 0x40000, scoped, tag = 'input window, operand 1, single buffered']
    #allocation7 [shape = 's32[1]{0}', space=sflag, size = 0x4, scoped, tag = 'scoped memory for tpu_custom_call.1']
    #allocation8 [shape = 'u8[65536]{0}', space=vmem, size = 0x10000, scoped, tag = 'input window, operand 2']
    #allocation9 [shape = 'u8[4096]{0}', space=vmem, size = 0x1000, scoped, tag = 'output window, operand 0, single buffered']
    %11 = vsyncpa [#allocation4], 0
    %12 = vsyncpa [#allocation7], 0
    %13 = vsyncpa [#allocation5], 0
    loop: start=0, step=1, limit=5
    $region2: #{tpu_custom_call.1} parent=1 // loop_pre_header
      _
    $region3: #{tpu_custom_call.1} parent=1 // loop_header
      %s15 = sphi 0, %s19
      %p16 = scmp.ge.s32.totalorder %s15, 5
      %s23 = sphi 0, %s23
      %s25 = sphi 0, %s23
      %s26 = sphi 0, %s25
      %s40 = sphi 0, %s26
      %s44 = sphi 0, %s44
      %s46 = sphi 0, %s44
      %s47 = sphi 0, %s46
      %s61 = sphi 0, %s47
      %s67 = sphi 0, %s69
      %s70 = sphi 0, %s67
      %s71 = sphi 0, %s70
      %s87 = sphi 0, %s71
      %s93 = sphi 0, %s95
      %s96 = sphi 0, %s93
      %s97 = sphi 0, %s96
      %s113 = sphi 0, %s97
      %s119 = sphi 0, %s121
      %s122 = sphi 0, %s119
      %s123 = sphi 0, %s122
      %s139 = sphi 0, %s123
      %s143 = sphi 0, %s143
      %s145 = sphi 0, %s143
      %s146 = sphi 0, %s145
      %s160 = sphi 0, %s146
      %s164 = sphi 0, %s164
      %s166 = sphi 0, %s164
      %s167 = sphi 0, %s166
      %s181 = sphi 0, %s167
    $region4: #{tpu_custom_call.1} parent=1 // loop_header_branch
      %18 = sbr.rel (%p16) target = $region8
    $region5: #{tpu_custom_call.1} parent=1 // loop_body
      %s20 = ssub.s32 %s15, 1
      %s21 = ssub.s32 %s15, 2
      %s22 = sadd.s32 %s15, 1
      %s24 = sadd.s32 %s23, 1
      %p27 = scmp.eq.s32.totalorder %s15, 2
      %p28 = scmp.ne.s32.totalorder %s23, %s25
      %p29 = scmp.eq.s32.totalorder %s15, 0
      %p30 = por %p28, %p29
      %p31 = scmp.ne.s32.totalorder %s23, %s25
      %p32 = scmp.eq.s32.totalorder %s20, 2
      %p33 = por %p31, %p32
      %p34 = scmp.ne.s32.totalorder %s25, %s26
      %p35 = scmp.eq.s32.totalorder %s20, 0
      %p36 = por %p34, %p35
      %p37 = scmp.ne.s32.totalorder %s25, %s26
      %p38 = scmp.eq.s32.totalorder %s21, 2
      %p39 = por %p37, %p38
      %p41 = scmp.ne.s32.totalorder %s26, %s40
      %p42 = scmp.eq.s32.totalorder %s21, 0
      %p43 = por %p41, %p42
      %s45 = sadd.s32 %s44, 1
      %p48 = scmp.eq.s32.totalorder %s15, 2
      %p49 = scmp.ne.s32.totalorder %s44, %s46
      %p50 = scmp.eq.s32.totalorder %s15, 0
      %p51 = por %p49, %p50
      %p52 = scmp.ne.s32.totalorder %s44, %s46
      %p53 = scmp.eq.s32.totalorder %s20, 2
      %p54 = por %p52, %p53
      %p55 = scmp.ne.s32.totalorder %s46, %s47
      %p56 = scmp.eq.s32.totalorder %s20, 0
      %p57 = por %p55, %p56
      %p58 = scmp.ne.s32.totalorder %s46, %s47
      %p59 = scmp.eq.s32.totalorder %s21, 2
      %p60 = por %p58, %p59
      %p62 = scmp.ne.s32.totalorder %s47, %s61
      %p63 = scmp.eq.s32.totalorder %s21, 0
      %p64 = por %p62, %p63
      %s65 = ssub.s32 %s15, %s22
      %p66 = scmp.eq.s32.totalorder %s65, 0
      %s68 = sadd.s32 %s67, 1
      %s69 = scalar_select %p66, %s67, %s68
      %p72 = pneg %p66
      %p73 = scmp.eq.s32.totalorder %s15, 2
      %p74 = por %p72, %p73
      %p75 = scmp.ne.s32.totalorder %s67, %s70
      %p76 = scmp.eq.s32.totalorder %s15, 0
      %p77 = por %p75, %p76
      %p78 = scmp.ne.s32.totalorder %s67, %s70
      %p79 = scmp.eq.s32.totalorder %s20, 2
      %p80 = por %p78, %p79
      %p81 = scmp.ne.s32.totalorder %s70, %s71
      %p82 = scmp.eq.s32.totalorder %s20, 0
      %p83 = por %p81, %p82
      %p84 = scmp.ne.s32.totalorder %s70, %s71
      %p85 = scmp.eq.s32.totalorder %s21, 2
      %p86 = por %p84, %p85
      %p88 = scmp.ne.s32.totalorder %s71, %s87
      %p89 = scmp.eq.s32.totalorder %s21, 0
      %p90 = por %p88, %p89
      %s91 = ssub.s32 %s15, %s22
      %p92 = scmp.eq.s32.totalorder %s91, 0
      %s94 = sadd.s32 %s93, 1
      %s95 = scalar_select %p92, %s93, %s94
      %p98 = pneg %p92
      %p99 = scmp.eq.s32.totalorder %s15, 2
      %p100 = por %p98, %p99
      %p101 = scmp.ne.s32.totalorder %s93, %s96
      %p102 = scmp.eq.s32.totalorder %s15, 0
      %p103 = por %p101, %p102
      %p104 = scmp.ne.s32.totalorder %s93, %s96
      %p105 = scmp.eq.s32.totalorder %s20, 2
      %p106 = por %p104, %p105
      %p107 = scmp.ne.s32.totalorder %s96, %s97
      %p108 = scmp.eq.s32.totalorder %s20, 0
      %p109 = por %p107, %p108
      %p110 = scmp.ne.s32.totalorder %s96, %s97
      %p111 = scmp.eq.s32.totalorder %s21, 2
      %p112 = por %p110, %p111
      %p114 = scmp.ne.s32.totalorder %s97, %s113
      %p115 = scmp.eq.s32.totalorder %s21, 0
      %p116 = por %p114, %p115
      %s117 = ssub.s32 %s15, %s22
      %p118 = scmp.eq.s32.totalorder %s117, 0
      %s120 = sadd.s32 %s119, 1
      %s121 = scalar_select %p118, %s119, %s120
      %p124 = pneg %p118
      %p125 = scmp.eq.s32.totalorder %s15, 2
      %p126 = por %p124, %p125
      %p127 = scmp.ne.s32.totalorder %s119, %s122
      %p128 = scmp.eq.s32.totalorder %s15, 0
      %p129 = por %p127, %p128
      %p130 = scmp.ne.s32.totalorder %s119, %s122
      %p131 = scmp.eq.s32.totalorder %s20, 2
      %p132 = por %p130, %p131
      %p133 = scmp.ne.s32.totalorder %s122, %s123
      %p134 = scmp.eq.s32.totalorder %s20, 0
      %p135 = por %p133, %p134
      %p136 = scmp.ne.s32.totalorder %s122, %s123
      %p137 = scmp.eq.s32.totalorder %s21, 2
      %p138 = por %p136, %p137
      %p140 = scmp.ne.s32.totalorder %s123, %s139
      %p141 = scmp.eq.s32.totalorder %s21, 0
      %p142 = por %p140, %p141
      %s144 = sadd.s32 %s143, 1
      %p147 = scmp.eq.s32.totalorder %s15, 2
      %p148 = scmp.ne.s32.totalorder %s143, %s145
      %p149 = scmp.eq.s32.totalorder %s15, 0
      %p150 = por %p148, %p149
      %p151 = scmp.ne.s32.totalorder %s143, %s145
      %p152 = scmp.eq.s32.totalorder %s20, 2
      %p153 = por %p151, %p152
      %p154 = scmp.ne.s32.totalorder %s145, %s146
      %p155 = scmp.eq.s32.totalorder %s20, 0
      %p156 = por %p154, %p155
      %p157 = scmp.ne.s32.totalorder %s145, %s146
      %p158 = scmp.eq.s32.totalorder %s21, 2
      %p159 = por %p157, %p158
      %p161 = scmp.ne.s32.totalorder %s146, %s160
      %p162 = scmp.eq.s32.totalorder %s21, 0
      %p163 = por %p161, %p162
      %s165 = sadd.s32 %s164, 1
      %p168 = scmp.eq.s32.totalorder %s15, 2
      %p169 = scmp.ne.s32.totalorder %s164, %s166
      %p170 = scmp.eq.s32.totalorder %s15, 0
      %p171 = por %p169, %p170
      %p172 = scmp.ne.s32.totalorder %s164, %s166
      %p173 = scmp.eq.s32.totalorder %s20, 2
      %p174 = por %p172, %p173
      %p175 = scmp.ne.s32.totalorder %s166, %s167
      %p176 = scmp.eq.s32.totalorder %s20, 0
      %p177 = por %p175, %p176
      %p178 = scmp.ne.s32.totalorder %s166, %s167
      %p179 = scmp.eq.s32.totalorder %s21, 2
      %p180 = por %p178, %p179
      %p182 = scmp.ne.s32.totalorder %s167, %s181
      %p183 = scmp.eq.s32.totalorder %s21, 0
      %p184 = por %p182, %p183
      %p185 = scmp.le.s32.totalorder 1, %s15
      %p186 = scmp.lt.s32.totalorder %s15, 4
      %p187 = pnand %p185, %p186
      %p188 = pneg %p187
      // Predicated region
      $region9: #{tpu_custom_call.1} parent=5 // pred_check
        _
      $region10: #{tpu_custom_call.1} parent=5 // pred_check_branch
        %190 = sbr.rel (%p187) target = $region12
      $region11: #{tpu_custom_call.1} parent=5 // pred_region
        %s191 = ssub.s32 %s15, 1
        // Predicated region
        $region13: #{tpu_custom_call.1} parent=11 // pred_check
          %p192 = pneg %p36
        $region14: #{tpu_custom_call.1} parent=11 // pred_check_branch
          %194 = sbr.rel (%p192) target = $region16
        $region15: #{tpu_custom_call.1} parent=11 // pred_region
          %s196 = ssub.s32 2048, 2048
          %197 = vsyncadd [#allocation4], %s196
          %s198 = sshll.u32 [#allocation3], 4
          %s199 = int_to_ptr.vmem [resolvable:$true] %s198
          %204 = dma.hbm_to_vmem [thread:$0]  %s0, 2048, %s199, [#allocation4], 64, 64, 4
        $region16: #{tpu_custom_call.1} parent=11 // pred_fallthru
          _
        // Predicated region
        $region17: #{tpu_custom_call.1} parent=11 // pred_check
          %p205 = pneg %p57
        $region18: #{tpu_custom_call.1} parent=11 // pred_check_branch
          %207 = sbr.rel (%p205) target = $region20
        $region19: #{tpu_custom_call.1} parent=11 // pred_region
          %s209 = ssub.s32 8192, 8192
          %210 = vsyncadd [#allocation7], %s209
          %s211 = sshll.u32 [#allocation6], 4
          %s212 = int_to_ptr.vmem [resolvable:$true] %s211
          %217 = dma.hbm_to_vmem [thread:$0]  %s1, 8192, %s212, [#allocation7], 256, 256, 16
        $region20: #{tpu_custom_call.1} parent=11 // pred_fallthru
          _
        // Predicated region
        $region21: #{tpu_custom_call.1} parent=11 // pred_check
          %p218 = pneg %p156
        $region22: #{tpu_custom_call.1} parent=11 // pred_check_branch
          %220 = sbr.rel (%p218) target = $region24
        $region23: #{tpu_custom_call.1} parent=11 // pred_region
          _
        $region24: #{tpu_custom_call.1} parent=11 // pred_fallthru
          _
      $region12: #{tpu_custom_call.1} parent=5 // pred_fallthru
        _
      %p221 = scmp.lt.s32.totalorder %s15, 3
      // Predicated region
      $region25: #{tpu_custom_call.1} parent=5 // pred_check
        %p222 = pneg %p221
      $region26: #{tpu_custom_call.1} parent=5 // pred_check_branch
        %224 = sbr.rel (%p222) target = $region28
      $region27: #{tpu_custom_call.1} parent=5 // pred_region
        // Predicated region
        $region29: #{tpu_custom_call.1} parent=27 // pred_check
          %p225 = pneg %p77
        $region30: #{tpu_custom_call.1} parent=27 // pred_check_branch
          %227 = sbr.rel (%p225) target = $region32
        $region31: #{tpu_custom_call.1} parent=27 // pred_region
          %s228 = sand.u32 %s15, 1
          %s229 = scalar_lea.sflag [#allocation4], %s228
          %s230 = sand.u32 %s67, 1
          %s231 = smul.addr %s230, 64
          %s232 = scalar_lea.vmem [#allocation8], %s231
          %s234 = ssub.s32 1024, 1024
          %235 = vsyncadd %s229, %s234
          %s236 = smul.addr %s15, 16
          %s237 = smul.addr %s236, 64
          %s238 = scalar_lea.hbm %s2, %s237
          %s239 = sshll.u32 %s232, 4
          %s240 = int_to_ptr.vmem [resolvable:$true] %s239
          %245 = dma.hbm_to_vmem [thread:$0]  %s238, 1024, %s240, %s229, 64, 64, 4
        $region32: #{tpu_custom_call.1} parent=27 // pred_fallthru
          _
        // Predicated region
        $region33: #{tpu_custom_call.1} parent=27 // pred_check
          %p246 = pneg %p103
        $region34: #{tpu_custom_call.1} parent=27 // pred_check_branch
          %248 = sbr.rel (%p246) target = $region36
        $region35: #{tpu_custom_call.1} parent=27 // pred_region
          %p249 = scmp.lt.s32.totalorder %s15, 2
          %s250 = scalar_select %p249, %s15, 2
          %s251 = scalar_lea.vmem %s3, %s250
        $region36: #{tpu_custom_call.1} parent=27 // pred_fallthru
          _
        // Predicated region
        $region37: #{tpu_custom_call.1} parent=27 // pred_check
          %p252 = pneg %p129
        $region38: #{tpu_custom_call.1} parent=27 // pred_check_branch
          %254 = sbr.rel (%p252) target = $region40
        $region39: #{tpu_custom_call.1} parent=27 // pred_region
          %p255 = scmp.lt.s32.totalorder %s15, 2
          %s256 = scalar_select %p255, %s15, 2
          %s257 = scalar_lea.vmem %s4, %s256
        $region40: #{tpu_custom_call.1} parent=27 // pred_fallthru
          _
      $region28: #{tpu_custom_call.1} parent=5 // pred_fallthru
        _
      %p258 = scmp.le.s32.totalorder 1, %s15
      %p259 = scmp.lt.s32.totalorder %s15, 4
      %p260 = pnand %p258, %p259
      %p261 = pneg %p260
      // Predicated region
      $region41: #{tpu_custom_call.1} parent=5 // pred_check
        _
      $region42: #{tpu_custom_call.1} parent=5 // pred_check_branch
        %263 = sbr.rel (%p260) target = $region44
      $region43: #{tpu_custom_call.1} parent=5 // pred_region
        %s264 = ssub.s32 %s15, 1
        // Predicated region
        $region45: #{tpu_custom_call.1} parent=43 // pred_check
          %p265 = pneg %p36
        $region46: #{tpu_custom_call.1} parent=43 // pred_check_branch
          %267 = sbr.rel (%p265) target = $region48
        $region47: #{tpu_custom_call.1} parent=43 // pred_region
          %268 = dma.done [#allocation4], 2048
        $region48: #{tpu_custom_call.1} parent=43 // pred_fallthru
          _
        // Predicated region
        $region49: #{tpu_custom_call.1} parent=43 // pred_check
          %p269 = pneg %p57
        $region50: #{tpu_custom_call.1} parent=43 // pred_check_branch
          %271 = sbr.rel (%p269) target = $region52
        $region51: #{tpu_custom_call.1} parent=43 // pred_region
          %272 = dma.done [#allocation7], 8192
        $region52: #{tpu_custom_call.1} parent=43 // pred_fallthru
          _
        %s273 = sand.u32 %s20, 1
        %s274 = scalar_lea.sflag [#allocation4], %s273
        %s275 = sand.u32 %s70, 1
        %s276 = smul.addr %s275, 64
        %s277 = scalar_lea.vmem [#allocation8], %s276
        // Predicated region
        $region53: #{tpu_custom_call.1} parent=43 // pred_check
          %p278 = pneg %p83
        $region54: #{tpu_custom_call.1} parent=43 // pred_check_branch
          %280 = sbr.rel (%p278) target = $region56
        $region55: #{tpu_custom_call.1} parent=43 // pred_region
          %281 = dma.done %s274, 1024
        $region56: #{tpu_custom_call.1} parent=43 // pred_fallthru
          _
        %p282 = pneg %p36
        %p283 = pneg %p33
        %p284 = pneg %p57
        %p285 = pneg %p54
        %s286 = sand.u32 %s20, 1
        %s287 = scalar_lea.sflag [#allocation4], %s286
        %s288 = sand.u32 %s70, 1
        %s289 = smul.addr %s288, 64
        %s290 = scalar_lea.vmem [#allocation8], %s289
        %p291 = pneg %p83
        %p292 = pneg %p80
        %p293 = scmp.lt.s32.totalorder %s20, 2
        %s294 = scalar_select %p293, %s20, 2
        %s295 = scalar_lea.vmem %s3, %s294
        %p296 = pneg %p109
        %p297 = pneg %p106
        %p298 = scmp.lt.s32.totalorder %s20, 2
        %s299 = scalar_select %p298, %s20, 2
        %s300 = scalar_lea.vmem %s4, %s299
        %p301 = pneg %p135
        %p302 = pneg %p132
        %p303 = pneg %p156
        %p304 = pneg %p153
        %p305 = pneg %p177
        %p306 = pneg %p174
        %p307 = scmp.lt.s32.totalorder %s20, 2
        %s308 = scalar_select %p307, %s20, 2
        %s309 = scalar_lea.vmem %s3, %s308
        %p310 = scmp.lt.s32.totalorder %s20, 2
        %s311 = scalar_select %p310, %s20, 2
        %s312 = scalar_lea.vmem %s4, %s311
        %p314 = scmp.eq.s32.totalorder %s20, 0
        // Predicated region
        $region57: #{tpu_custom_call.1} parent=43 // pred_check
          %p315 = pneg %p314
        $region58: #{tpu_custom_call.1} parent=43 // pred_check_branch
          %317 = sbr.rel (%p315) target = $region60
        $region59: #{tpu_custom_call.1} parent=43 // pred_region
          %v318 = vld [vmem:[#allocation3] sm:$0xf]
          %v319 = vld [vmem:[#allocation3 + $0x4] sm:$0xf]
          %v320 = vld [vmem:[#allocation3 + $0x8] sm:$0xf]
          %v321 = vld [vmem:[#allocation3 + $0xc] sm:$0xf]
          %v322 = vld [vmem:[#allocation3 + $0x10] sm:$0xf]
          %v323 = vld [vmem:[#allocation3 + $0x14] sm:$0xf]
          %v324 = vld [vmem:[#allocation3 + $0x18] sm:$0xf]
          %v325 = vld [vmem:[#allocation3 + $0x1c] sm:$0xf]
          %v326 = vld [vmem:[#allocation3 + $0x20] sm:$0xf]
          %v327 = vld [vmem:[#allocation3 + $0x24] sm:$0xf]
          %v328 = vld [vmem:[#allocation3 + $0x28] sm:$0xf]
          %v329 = vld [vmem:[#allocation3 + $0x2c] sm:$0xf]
          %v330 = vld [vmem:[#allocation3 + $0x30] sm:$0xf]
          %v331 = vld [vmem:[#allocation3 + $0x34] sm:$0xf]
          %v332 = vld [vmem:[#allocation3 + $0x38] sm:$0xf]
          %v333 = vld [vmem:[#allocation3 + $0x3c] sm:$0xf]
          %v334 = vld [vmem:[#allocation3 + $0x40] sm:$0xf]
          %v335 = vld [vmem:[#allocation3 + $0x44] sm:$0xf]
          %v336 = vld [vmem:[#allocation3 + $0x48] sm:$0xf]
          %v337 = vld [vmem:[#allocation3 + $0x4c] sm:$0xf]
          %v338 = vld [vmem:[#allocation3 + $0x50] sm:$0xf]
          %v339 = vld [vmem:[#allocation3 + $0x54] sm:$0xf]
          %v340 = vld [vmem:[#allocation3 + $0x58] sm:$0xf]
          %v341 = vld [vmem:[#allocation3 + $0x5c] sm:$0xf]
          %v342 = vld [vmem:[#allocation3 + $0x60] sm:$0xf]
          %v343 = vld [vmem:[#allocation3 + $0x64] sm:$0xf]
          %v344 = vld [vmem:[#allocation3 + $0x68] sm:$0xf]
          %v345 = vld [vmem:[#allocation3 + $0x6c] sm:$0xf]
          %v346 = vld [vmem:[#allocation3 + $0x70] sm:$0xf]
          %v347 = vld [vmem:[#allocation3 + $0x74] sm:$0xf]
          %v348 = vld [vmem:[#allocation3 + $0x78] sm:$0xf]
          %v349 = vld [vmem:[#allocation3 + $0x7c] sm:$0xf]
          %v382 = vunpack.c.l.b16 %v318
          %v383 = vunpack.c.l.b16 %v319
          %v384 = vunpack.c.l.b16 %v320
          %v385 = vunpack.c.l.b16 %v321
          %v386 = vunpack.c.l.b16 %v322
          %v387 = vunpack.c.l.b16 %v323
          %v388 = vunpack.c.l.b16 %v324
          %v389 = vunpack.c.l.b16 %v325
          %v390 = vunpack.c.l.b16 %v326
          %v391 = vunpack.c.l.b16 %v327
          %v392 = vunpack.c.l.b16 %v328
          %v393 = vunpack.c.l.b16 %v329
          %v394 = vunpack.c.l.b16 %v330
          %v395 = vunpack.c.l.b16 %v331
          %v396 = vunpack.c.l.b16 %v332
          %v397 = vunpack.c.l.b16 %v333
          %v398 = vunpack.c.l.b16 %v334
          %v399 = vunpack.c.l.b16 %v335
          %v400 = vunpack.c.l.b16 %v336
          %v401 = vunpack.c.l.b16 %v337
          %v402 = vunpack.c.l.b16 %v338
          %v403 = vunpack.c.l.b16 %v339
          %v404 = vunpack.c.l.b16 %v340
          %v405 = vunpack.c.l.b16 %v341
          %v406 = vunpack.c.l.b16 %v342
          %v407 = vunpack.c.l.b16 %v343
          %v408 = vunpack.c.l.b16 %v344
          %v409 = vunpack.c.l.b16 %v345
          %v410 = vunpack.c.l.b16 %v346
          %v411 = vunpack.c.l.b16 %v347
          %v412 = vunpack.c.l.b16 %v348
          %v413 = vunpack.c.l.b16 %v349
          %v414 = vpack.c.b16 %v383, %v382
          %v415 = vpack.c.b16 %v385, %v384
          %v416 = vpack.c.b16 %v387, %v386
          %v417 = vpack.c.b16 %v389, %v388
          %v418 = vpack.c.b16 %v391, %v390
          %v419 = vpack.c.b16 %v393, %v392
          %v420 = vpack.c.b16 %v395, %v394
          %v421 = vpack.c.b16 %v397, %v396
          %v422 = vpack.c.b16 %v399, %v398
          %v423 = vpack.c.b16 %v401, %v400
          %v424 = vpack.c.b16 %v403, %v402
          %v425 = vpack.c.b16 %v405, %v404
          %v426 = vpack.c.b16 %v407, %v406
          %v427 = vpack.c.b16 %v409, %v408
          %v428 = vpack.c.b16 %v411, %v410
          %v429 = vpack.c.b16 %v413, %v412
          %446 = vst [vmem:[#allocation2] sm:$0xff] %v414
          %447 = vst [vmem:[#allocation2 + $0x8] sm:$0xff] %v415
          %448 = vst [vmem:[#allocation2 + $0x10] sm:$0xff] %v416
          %449 = vst [vmem:[#allocation2 + $0x18] sm:$0xff] %v417
          %450 = vst [vmem:[#allocation2 + $0x20] sm:$0xff] %v418
          %451 = vst [vmem:[#allocation2 + $0x28] sm:$0xff] %v419
          %452 = vst [vmem:[#allocation2 + $0x30] sm:$0xff] %v420
          %453 = vst [vmem:[#allocation2 + $0x38] sm:$0xff] %v421
          %454 = vst [vmem:[#allocation2 + $0x40] sm:$0xff] %v422
          %455 = vst [vmem:[#allocation2 + $0x48] sm:$0xff] %v423
          %456 = vst [vmem:[#allocation2 + $0x50] sm:$0xff] %v424
          %457 = vst [vmem:[#allocation2 + $0x58] sm:$0xff] %v425
          %458 = vst [vmem:[#allocation2 + $0x60] sm:$0xff] %v426
          %459 = vst [vmem:[#allocation2 + $0x68] sm:$0xff] %v427
          %460 = vst [vmem:[#allocation2 + $0x70] sm:$0xff] %v428
          %461 = vst [vmem:[#allocation2 + $0x78] sm:$0xff] %v429
        $region60: #{tpu_custom_call.1} parent=43 // pred_fallthru
          _
        %v462 = vld [vmem:[#allocation2] sm:$0xff]
        %v463 = vld [vmem:[#allocation2 + $0x8] sm:$0xff]
        %v464 = vld [vmem:[#allocation2 + $0x10] sm:$0xff]
        %v465 = vld [vmem:[#allocation2 + $0x18] sm:$0xff]
        %v466 = vld [vmem:[#allocation2 + $0x20] sm:$0xff]
        %v467 = vld [vmem:[#allocation2 + $0x28] sm:$0xff]
        %v468 = vld [vmem:[#allocation2 + $0x30] sm:$0xff]
        %v469 = vld [vmem:[#allocation2 + $0x38] sm:$0xff]
        %v470 = vld [vmem:[#allocation2 + $0x40] sm:$0xff]
        %v471 = vld [vmem:[#allocation2 + $0x48] sm:$0xff]
        %v472 = vld [vmem:[#allocation2 + $0x50] sm:$0xff]
        %v473 = vld [vmem:[#allocation2 + $0x58] sm:$0xff]
        %v474 = vld [vmem:[#allocation2 + $0x60] sm:$0xff]
        %v475 = vld [vmem:[#allocation2 + $0x68] sm:$0xff]
        %v476 = vld [vmem:[#allocation2 + $0x70] sm:$0xff]
        %v477 = vld [vmem:[#allocation2 + $0x78] sm:$0xff]
        %v478 = vld [vmem:[%s277] sm:$0xf]
        %v479 = vld [vmem:[%s277 + $0x4] sm:$0xf]
        %v480 = vld [vmem:[%s277 + $0x8] sm:$0xf]
        %v481 = vld [vmem:[%s277 + $0xc] sm:$0xf]
        %v482 = vld [vmem:[%s277 + $0x10] sm:$0xf]
        %v483 = vld [vmem:[%s277 + $0x14] sm:$0xf]
        %v484 = vld [vmem:[%s277 + $0x18] sm:$0xf]
        %v485 = vld [vmem:[%s277 + $0x1c] sm:$0xf]
        %v486 = vld [vmem:[%s277 + $0x20] sm:$0xf]
        %v487 = vld [vmem:[%s277 + $0x24] sm:$0xf]
        %v488 = vld [vmem:[%s277 + $0x28] sm:$0xf]
        %v489 = vld [vmem:[%s277 + $0x2c] sm:$0xf]
        %v490 = vld [vmem:[%s277 + $0x30] sm:$0xf]
        %v491 = vld [vmem:[%s277 + $0x34] sm:$0xf]
        %v492 = vld [vmem:[%s277 + $0x38] sm:$0xf]
        %v493 = vld [vmem:[%s277 + $0x3c] sm:$0xf]
        %v510 = vunpack.c.l.b16 %v478
        %v511 = vunpack.c.l.b16 %v479
        %v512 = vunpack.c.l.b16 %v480
        %v513 = vunpack.c.l.b16 %v481
        %v514 = vunpack.c.l.b16 %v482
        %v515 = vunpack.c.l.b16 %v483
        %v516 = vunpack.c.l.b16 %v484
        %v517 = vunpack.c.l.b16 %v485
        %v518 = vunpack.c.l.b16 %v486
        %v519 = vunpack.c.l.b16 %v487
        %v520 = vunpack.c.l.b16 %v488
        %v521 = vunpack.c.l.b16 %v489
        %v522 = vunpack.c.l.b16 %v490
        %v523 = vunpack.c.l.b16 %v491
        %v524 = vunpack.c.l.b16 %v492
        %v525 = vunpack.c.l.b16 %v493
        %v526 = vpack.c.b16 %v511, %v510
        %v527 = vpack.c.b16 %v513, %v512
        %v528 = vpack.c.b16 %v515, %v514
        %v529 = vpack.c.b16 %v517, %v516
        %v530 = vpack.c.b16 %v519, %v518
        %v531 = vpack.c.b16 %v521, %v520
        %v532 = vpack.c.b16 %v523, %v522
        %v533 = vpack.c.b16 %v525, %v524
        %542 = vmatprep.subr.bf16.mxu0 0
        %543 = vmatpush1.bf16.msra.mxu0 %v526
        %544 = vmatprep.subr.bf16.mxu0 0
        %545 = vmatpush1.bf16.msra.mxu0 %v527
        %546 = vmatprep.subr.bf16.mxu0 0
        %547 = vmatpush1.bf16.msra.mxu0 %v528
        %548 = vmatprep.subr.bf16.mxu0 0
        %549 = vmatpush1.bf16.msra.mxu0 %v529
        %550 = vmatprep.subr.bf16.mxu0 0
        %551 = vmatpush1.bf16.msra.mxu0 %v530
        %552 = vmatprep.subr.bf16.mxu0 0
        %553 = vmatpush1.bf16.msra.mxu0 %v531
        %554 = vmatprep.subr.bf16.mxu0 0
        %555 = vmatpush1.bf16.msra.mxu0 %v532
        %556 = vmatprep.subr.bf16.mxu0 0
        %557 = vmatpush1.bf16.msra.mxu0 %v533
        %558 = vmatprep.subr.bf16.mxu0 0
        %559 = vmatpush1.bf16.msra.mxu0 0
        %560 = vmatprep.subr.bf16.mxu0 0
        %561 = vmatpush1.bf16.msra.mxu0 0
        %562 = vmatprep.subr.bf16.mxu0 0
        %563 = vmatpush1.bf16.msra.mxu0 0
        %564 = vmatprep.subr.bf16.mxu0 0
        %565 = vmatpush1.bf16.msra.mxu0 0
        %566 = vmatprep.subr.bf16.mxu0 0
        %567 = vmatpush1.bf16.msra.mxu0 0
        %568 = vmatprep.subr.bf16.mxu0 0
        %569 = vmatpush1.bf16.msra.mxu0 0
        %570 = vmatprep.subr.bf16.mxu0 0
        %571 = vmatpush1.bf16.msra.mxu0 0
        %572 = vmatprep.subr.bf16.mxu0 0
        %573 = vmatpush1.bf16.msra.mxu0 0
        %574 = vmatprep.mubr.bf16.mxu0 0
        %575 = vmatmul.mubr.bf16.gmra.mrb[0].mxu0 %v462
        %v576 = vpop.f32.mrb[0].mxu0
        %v577 = vadd.f32 0.0, %v576
        %v578 = vpop.f32.mrb[0].mxu0
        %v579 = vpop.f32.mrb[0].mxu0
        %v580 = vadd.f32 0.0, %v579
        %v581 = vpop.f32.mrb[0].mxu0
        %582 = vmatprep.mubr.bf16.mxu0 0
        %583 = vmatmul.mubr.bf16.gmra.mrb[0].mxu0 %v463
        %v584 = vpop.f32.mrb[0].mxu0
        %v585 = vadd.f32 0.0, %v584
        %v586 = vpop.f32.mrb[0].mxu0
        %v587 = vpop.f32.mrb[0].mxu0
        %v588 = vadd.f32 0.0, %v587
        %v589 = vpop.f32.mrb[0].mxu0
        %590 = vmatprep.mubr.bf16.mxu0 0
        %591 = vmatmul.mubr.bf16.gmra.mrb[0].mxu0 %v464
        %v592 = vpop.f32.mrb[0].mxu0
        %v593 = vadd.f32 0.0, %v592
        %v594 = vpop.f32.mrb[0].mxu0
        %v595 = vpop.f32.mrb[0].mxu0
        %v596 = vadd.f32 0.0, %v595
        %v597 = vpop.f32.mrb[0].mxu0
        %598 = vmatprep.mubr.bf16.mxu0 0
        %599 = vmatmul.mubr.bf16.gmra.mrb[0].mxu0 %v465
        %v600 = vpop.f32.mrb[0].mxu0
        %v601 = vadd.f32 0.0, %v600
        %v602 = vpop.f32.mrb[0].mxu0
        %v603 = vpop.f32.mrb[0].mxu0
        %v604 = vadd.f32 0.0, %v603
        %v605 = vpop.f32.mrb[0].mxu0
        %606 = vmatprep.mubr.bf16.mxu0 0
        %607 = vmatmul.mubr.bf16.gmra.mrb[0].mxu0 %v466
        %v608 = vpop.f32.mrb[0].mxu0
        %v609 = vadd.f32 0.0, %v608
        %v610 = vpop.f32.mrb[0].mxu0
        %v611 = vpop.f32.mrb[0].mxu0
        %v612 = vadd.f32 0.0, %v611
        %v613 = vpop.f32.mrb[0].mxu0
        %614 = vmatprep.mubr.bf16.mxu0 0
        %615 = vmatmul.mubr.bf16.gmra.mrb[0].mxu0 %v467
        %v616 = vpop.f32.mrb[0].mxu0
        %v617 = vadd.f32 0.0, %v616
        %v618 = vpop.f32.mrb[0].mxu0
        %v619 = vpop.f32.mrb[0].mxu0
        %v620 = vadd.f32 0.0, %v619
        %v621 = vpop.f32.mrb[0].mxu0
        %622 = vmatprep.mubr.bf16.mxu0 0
        %623 = vmatmul.mubr.bf16.gmra.mrb[0].mxu0 %v468
        %v624 = vpop.f32.mrb[0].mxu0
        %v625 = vadd.f32 0.0, %v624
        %v626 = vpop.f32.mrb[0].mxu0
        %v627 = vpop.f32.mrb[0].mxu0
        %v628 = vadd.f32 0.0, %v627
        %v629 = vpop.f32.mrb[0].mxu0
        %630 = vmatprep.mubr.bf16.mxu0 0
        %631 = vmatmul.mubr.bf16.gmra.mrb[0].mxu0 %v469
        %v632 = vpop.f32.mrb[0].mxu0
        %v633 = vadd.f32 0.0, %v632
        %v634 = vpop.f32.mrb[0].mxu0
        %v635 = vpop.f32.mrb[0].mxu0
        %v636 = vadd.f32 0.0, %v635
        %v637 = vpop.f32.mrb[0].mxu0
        %638 = vmatprep.mubr.bf16.mxu0 0
        %639 = vmatmul.mubr.bf16.gmra.mrb[0].mxu0 %v470
        %v640 = vpop.f32.mrb[0].mxu0
        %v641 = vadd.f32 0.0, %v640
        %v642 = vpop.f32.mrb[0].mxu0
        %v643 = vpop.f32.mrb[0].mxu0
        %v644 = vadd.f32 0.0, %v643
        %v645 = vpop.f32.mrb[0].mxu0
        %646 = vmatprep.mubr.bf16.mxu0 0
        %647 = vmatmul.mubr.bf16.gmra.mrb[0].mxu0 %v471
        %v648 = vpop.f32.mrb[0].mxu0
        %v649 = vadd.f32 0.0, %v648
        %v650 = vpop.f32.mrb[0].mxu0
        %v651 = vpop.f32.mrb[0].mxu0
        %v652 = vadd.f32 0.0, %v651
        %v653 = vpop.f32.mrb[0].mxu0
        %654 = vmatprep.mubr.bf16.mxu0 0
        %655 = vmatmul.mubr.bf16.gmra.mrb[0].mxu0 %v472
        %v656 = vpop.f32.mrb[0].mxu0
        %v657 = vadd.f32 0.0, %v656
        %v658 = vpop.f32.mrb[0].mxu0
        %v659 = vpop.f32.mrb[0].mxu0
        %v660 = vadd.f32 0.0, %v659
        %v661 = vpop.f32.mrb[0].mxu0
        %662 = vmatprep.mubr.bf16.mxu0 0
        %663 = vmatmul.mubr.bf16.gmra.mrb[0].mxu0 %v473
        %v664 = vpop.f32.mrb[0].mxu0
        %v665 = vadd.f32 0.0, %v664
        %v666 = vpop.f32.mrb[0].mxu0
        %v667 = vpop.f32.mrb[0].mxu0
        %v668 = vadd.f32 0.0, %v667
        %v669 = vpop.f32.mrb[0].mxu0
        %670 = vmatprep.mubr.bf16.mxu0 0
        %671 = vmatmul.mubr.bf16.gmra.mrb[0].mxu0 %v474
        %v672 = vpop.f32.mrb[0].mxu0
        %v673 = vadd.f32 0.0, %v672
        %v674 = vpop.f32.mrb[0].mxu0
        %v675 = vpop.f32.mrb[0].mxu0
        %v676 = vadd.f32 0.0, %v675
        %v677 = vpop.f32.mrb[0].mxu0
        %678 = vmatprep.mubr.bf16.mxu0 0
        %679 = vmatmul.mubr.bf16.gmra.mrb[0].mxu0 %v475
        %v680 = vpop.f32.mrb[0].mxu0
        %v681 = vadd.f32 0.0, %v680
        %v682 = vpop.f32.mrb[0].mxu0
        %v683 = vpop.f32.mrb[0].mxu0
        %v684 = vadd.f32 0.0, %v683
        %v685 = vpop.f32.mrb[0].mxu0
        %686 = vmatprep.mubr.bf16.mxu0 0
        %687 = vmatmul.mubr.bf16.gmra.mrb[0].mxu0 %v476
        %v688 = vpop.f32.mrb[0].mxu0
        %v689 = vadd.f32 0.0, %v688
        %v690 = vpop.f32.mrb[0].mxu0
        %v691 = vpop.f32.mrb[0].mxu0
        %v692 = vadd.f32 0.0, %v691
        %v693 = vpop.f32.mrb[0].mxu0
        %694 = vmatprep.mubr.bf16.mxu0 0
        %695 = vmatmul.mubr.bf16.gmra.mrb[0].mxu0 %v477
        %v696 = vpop.f32.mrb[0].mxu0
        %v697 = vadd.f32 0.0, %v696
        %v698 = vpop.f32.mrb[0].mxu0
        %v699 = vpop.f32.mrb[0].mxu0
        %v700 = vadd.f32 0.0, %v699
        %v701 = vpop.f32.mrb[0].mxu0
        %702 = vdwg.mxu0
        %v703 = vld [vmem:[%s309] sm:$0x1]
        %704 = vmatprep.subr.bf16.mxu0 0
        %705 = vmatpush1.bf16.xpose.msra.mxu0 %v462
        %706 = vmatprep.subr.bf16.mxu0 0
        %707 = vmatpush1.bf16.xpose.msra.mxu0 %v463
        %708 = vmatprep.subr.bf16.mxu0 0
        %709 = vmatpush1.bf16.xpose.msra.mxu0 %v464
        %710 = vmatprep.subr.bf16.mxu0 0
        %711 = vmatpush1.bf16.xpose.msra.mxu0 %v465
        %712 = vmatprep.subr.bf16.mxu0 0
        %713 = vmatpush1.bf16.xpose.msra.mxu0 %v466
        %714 = vmatprep.subr.bf16.mxu0 0
        %715 = vmatpush1.bf16.xpose.msra.mxu0 %v467
        %716 = vmatprep.subr.bf16.mxu0 0
        %717 = vmatpush1.bf16.xpose.msra.mxu0 %v468
        %718 = vmatprep.subr.bf16.mxu0 0
        %719 = vmatpush1.bf16.xpose.msra.mxu0 %v469
        %720 = vmatprep.subr.bf16.mxu0 0
        %721 = vmatpush1.bf16.xpose.msra.mxu0 %v470
        %722 = vmatprep.subr.bf16.mxu0 0
        %723 = vmatpush1.bf16.xpose.msra.mxu0 %v471
        %724 = vmatprep.subr.bf16.mxu0 0
        %725 = vmatpush1.bf16.xpose.msra.mxu0 %v472
        %726 = vmatprep.subr.bf16.mxu0 0
        %727 = vmatpush1.bf16.xpose.msra.mxu0 %v473
        %728 = vmatprep.subr.bf16.mxu0 0
        %729 = vmatpush1.bf16.xpose.msra.mxu0 %v474
        %730 = vmatprep.subr.bf16.mxu0 0
        %731 = vmatpush1.bf16.xpose.msra.mxu0 %v475
        %732 = vmatprep.subr.bf16.mxu0 0
        %733 = vmatpush1.bf16.xpose.msra.mxu0 %v476
        %734 = vmatprep.subr.bf16.mxu0 0
        %735 = vmatpush1.bf16.xpose.msra.mxu0 %v477
        %736 = vmatprep.mubr.bf16.mxu0 0
        %737 = vmatmul.mubr.bf16.gmra.mrb[0].mxu0 %v703
        %v738 = vpop.f32.mrb[0].mxu0
        %v739 = vadd.f32 0.0, %v738
        %v740 = vpop.f32.mrb[0].mxu0
        %v741 = vadd.f32 0.0, %v740
        %v742 = vpop.f32.mrb[0].mxu0
        %v743 = vpop.f32.mrb[0].mxu0
        %744 = vdwg.mxu0
        %746 = vset.pattern.permute.xlu0 127
        %747 = vperm.xlu0 %746, %v577
        %v748 = vpop.permute.xlu0 %747
        %751 = vset.pattern.permute.xlu0 127
        %752 = vperm.xlu0 %751, %v580
        %v753 = vpop.permute.xlu0 %752
        %756 = vset.pattern.permute.xlu0 127
        %757 = vperm.xlu0 %756, %v585
        %v758 = vpop.permute.xlu0 %757
        %761 = vset.pattern.permute.xlu0 127
        %762 = vperm.xlu0 %761, %v588
        %v763 = vpop.permute.xlu0 %762
        %766 = vset.pattern.permute.xlu0 127
        %767 = vperm.xlu0 %766, %v593
        %v768 = vpop.permute.xlu0 %767
        %771 = vset.pattern.permute.xlu0 127
        %772 = vperm.xlu0 %771, %v596
        %v773 = vpop.permute.xlu0 %772
        %776 = vset.pattern.permute.xlu0 127
        %777 = vperm.xlu0 %776, %v601
        %v778 = vpop.permute.xlu0 %777
        %781 = vset.pattern.permute.xlu0 127
        %782 = vperm.xlu0 %781, %v604
        %v783 = vpop.permute.xlu0 %782
        %786 = vset.pattern.permute.xlu0 127
        %787 = vperm.xlu0 %786, %v609
        %v788 = vpop.permute.xlu0 %787
        %791 = vset.pattern.permute.xlu0 127
        %792 = vperm.xlu0 %791, %v612
        %v793 = vpop.permute.xlu0 %792
        %796 = vset.pattern.permute.xlu0 127
        %797 = vperm.xlu0 %796, %v617
        %v798 = vpop.permute.xlu0 %797
        %801 = vset.pattern.permute.xlu0 127
        %802 = vperm.xlu0 %801, %v620
        %v803 = vpop.permute.xlu0 %802
        %806 = vset.pattern.permute.xlu0 127
        %807 = vperm.xlu0 %806, %v625
        %v808 = vpop.permute.xlu0 %807
        %811 = vset.pattern.permute.xlu0 127
        %812 = vperm.xlu0 %811, %v628
        %v813 = vpop.permute.xlu0 %812
        %816 = vset.pattern.permute.xlu0 127
        %817 = vperm.xlu0 %816, %v633
        %v818 = vpop.permute.xlu0 %817
        %821 = vset.pattern.permute.xlu0 127
        %822 = vperm.xlu0 %821, %v636
        %v823 = vpop.permute.xlu0 %822
        %826 = vset.pattern.permute.xlu0 127
        %827 = vperm.xlu0 %826, %v641
        %v828 = vpop.permute.xlu0 %827
        %831 = vset.pattern.permute.xlu0 127
        %832 = vperm.xlu0 %831, %v644
        %v833 = vpop.permute.xlu0 %832
        %836 = vset.pattern.permute.xlu0 127
        %837 = vperm.xlu0 %836, %v649
        %v838 = vpop.permute.xlu0 %837
        %841 = vset.pattern.permute.xlu0 127
        %842 = vperm.xlu0 %841, %v652
        %v843 = vpop.permute.xlu0 %842
        %846 = vset.pattern.permute.xlu0 127
        %847 = vperm.xlu0 %846, %v657
        %v848 = vpop.permute.xlu0 %847
        %851 = vset.pattern.permute.xlu0 127
        %852 = vperm.xlu0 %851, %v660
        %v853 = vpop.permute.xlu0 %852
        %856 = vset.pattern.permute.xlu0 127
        %857 = vperm.xlu0 %856, %v665
        %v858 = vpop.permute.xlu0 %857
        %861 = vset.pattern.permute.xlu0 127
        %862 = vperm.xlu0 %861, %v668
        %v863 = vpop.permute.xlu0 %862
        %866 = vset.pattern.permute.xlu0 127
        %867 = vperm.xlu0 %866, %v673
        %v868 = vpop.permute.xlu0 %867
        %871 = vset.pattern.permute.xlu0 127
        %872 = vperm.xlu0 %871, %v676
        %v873 = vpop.permute.xlu0 %872
        %876 = vset.pattern.permute.xlu0 127
        %877 = vperm.xlu0 %876, %v681
        %v878 = vpop.permute.xlu0 %877
        %881 = vset.pattern.permute.xlu0 127
        %882 = vperm.xlu0 %881, %v684
        %v883 = vpop.permute.xlu0 %882
        %886 = vset.pattern.permute.xlu0 127
        %887 = vperm.xlu0 %886, %v689
        %v888 = vpop.permute.xlu0 %887
        %891 = vset.pattern.permute.xlu0 127
        %892 = vperm.xlu0 %891, %v692
        %v893 = vpop.permute.xlu0 %892
        %896 = vset.pattern.permute.xlu0 127
        %897 = vperm.xlu0 %896, %v697
        %v898 = vpop.permute.xlu0 %897
        %901 = vset.pattern.permute.xlu0 127
        %902 = vperm.xlu0 %901, %v700
        %v903 = vpop.permute.xlu0 %902
        %v905 = vlaneseq
        %v906 = vshrl.u32 %v905, 7
        %v907 = vsub.s32 0, %v906
        %v908 = vrot.slane %v739, %v907
        %v909 = vlaneseq
        %v910 = vshrl.u32 %v909, 7
        %v911 = vsub.s32 0, %v910
        %v912 = vrot.slane %v741, %v911
        %v913 = vadd.f32 %v748, %v908
        %v914 = vadd.f32 %v748, %v912
        %v915 = vadd.f32 %v753, %v908
        %v916 = vadd.f32 %v753, %v912
        %v917 = vadd.f32 %v758, %v908
        %v918 = vadd.f32 %v758, %v912
        %v919 = vadd.f32 %v763, %v908
        %v920 = vadd.f32 %v763, %v912
        %v921 = vadd.f32 %v768, %v908
        %v922 = vadd.f32 %v768, %v912
        %v923 = vadd.f32 %v773, %v908
        %v924 = vadd.f32 %v773, %v912
        %v925 = vadd.f32 %v778, %v908
        %v926 = vadd.f32 %v778, %v912
        %v927 = vadd.f32 %v783, %v908
        %v928 = vadd.f32 %v783, %v912
        %v929 = vadd.f32 %v788, %v908
        %v930 = vadd.f32 %v788, %v912
        %v931 = vadd.f32 %v793, %v908
        %v932 = vadd.f32 %v793, %v912
        %v933 = vadd.f32 %v798, %v908
        %v934 = vadd.f32 %v798, %v912
        %v935 = vadd.f32 %v803, %v908
        %v936 = vadd.f32 %v803, %v912
        %v937 = vadd.f32 %v808, %v908
        %v938 = vadd.f32 %v808, %v912
        %v939 = vadd.f32 %v813, %v908
        %v940 = vadd.f32 %v813, %v912
        %v941 = vadd.f32 %v818, %v908
        %v942 = vadd.f32 %v818, %v912
        %v943 = vadd.f32 %v823, %v908
        %v944 = vadd.f32 %v823, %v912
        %v945 = vadd.f32 %v828, %v908
        %v946 = vadd.f32 %v828, %v912
        %v947 = vadd.f32 %v833, %v908
        %v948 = vadd.f32 %v833, %v912
        %v949 = vadd.f32 %v838, %v908
        %v950 = vadd.f32 %v838, %v912
        %v951 = vadd.f32 %v843, %v908
        %v952 = vadd.f32 %v843, %v912
        %v953 = vadd.f32 %v848, %v908
        %v954 = vadd.f32 %v848, %v912
        %v955 = vadd.f32 %v853, %v908
        %v956 = vadd.f32 %v853, %v912
        %v957 = vadd.f32 %v858, %v908
        %v958 = vadd.f32 %v858, %v912
        %v959 = vadd.f32 %v863, %v908
        %v960 = vadd.f32 %v863, %v912
        %v961 = vadd.f32 %v868, %v908
        %v962 = vadd.f32 %v868, %v912
        %v963 = vadd.f32 %v873, %v908
        %v964 = vadd.f32 %v873, %v912
        %v965 = vadd.f32 %v878, %v908
        %v966 = vadd.f32 %v878, %v912
        %v967 = vadd.f32 %v883, %v908
        %v968 = vadd.f32 %v883, %v912
        %v969 = vadd.f32 %v888, %v908
        %v970 = vadd.f32 %v888, %v912
        %v971 = vadd.f32 %v893, %v908
        %v972 = vadd.f32 %v893, %v912
        %v973 = vadd.f32 %v898, %v908
        %v974 = vadd.f32 %v898, %v912
        %v975 = vadd.f32 %v903, %v908
        %v976 = vadd.f32 %v903, %v912
        %v977 = vmul.f32 %v913, 0.2
        %v978 = vmul.f32 %v914, 0.2
        %v979 = vmul.f32 %v915, 0.2
        %v980 = vmul.f32 %v916, 0.2
        %v981 = vmul.f32 %v917, 0.2
        %v982 = vmul.f32 %v918, 0.2
        %v983 = vmul.f32 %v919, 0.2
        %v984 = vmul.f32 %v920, 0.2
        %v985 = vmul.f32 %v921, 0.2
        %v986 = vmul.f32 %v922, 0.2
        %v987 = vmul.f32 %v923, 0.2
        %v988 = vmul.f32 %v924, 0.2
        %v989 = vmul.f32 %v925, 0.2
        %v990 = vmul.f32 %v926, 0.2
        %v991 = vmul.f32 %v927, 0.2
        %v992 = vmul.f32 %v928, 0.2
        %v993 = vmul.f32 %v929, 0.2
        %v994 = vmul.f32 %v930, 0.2
        %v995 = vmul.f32 %v931, 0.2
        %v996 = vmul.f32 %v932, 0.2
        %v997 = vmul.f32 %v933, 0.2
        %v998 = vmul.f32 %v934, 0.2
        %v999 = vmul.f32 %v935, 0.2
        %v1000 = vmul.f32 %v936, 0.2
        %v1001 = vmul.f32 %v937, 0.2
        %v1002 = vmul.f32 %v938, 0.2
        %v1003 = vmul.f32 %v939, 0.2
        %v1004 = vmul.f32 %v940, 0.2
        %v1005 = vmul.f32 %v941, 0.2
        %v1006 = vmul.f32 %v942, 0.2
        %v1007 = vmul.f32 %v943, 0.2
        %v1008 = vmul.f32 %v944, 0.2
        %v1009 = vmul.f32 %v945, 0.2
        %v1010 = vmul.f32 %v946, 0.2
        %v1011 = vmul.f32 %v947, 0.2
        %v1012 = vmul.f32 %v948, 0.2
        %v1013 = vmul.f32 %v949, 0.2
        %v1014 = vmul.f32 %v950, 0.2
        %v1015 = vmul.f32 %v951, 0.2
        %v1016 = vmul.f32 %v952, 0.2
        %v1017 = vmul.f32 %v953, 0.2
        %v1018 = vmul.f32 %v954, 0.2
        %v1019 = vmul.f32 %v955, 0.2
        %v1020 = vmul.f32 %v956, 0.2
        %v1021 = vmul.f32 %v957, 0.2
        %v1022 = vmul.f32 %v958, 0.2
        %v1023 = vmul.f32 %v959, 0.2
        %v1024 = vmul.f32 %v960, 0.2
        %v1025 = vmul.f32 %v961, 0.2
        %v1026 = vmul.f32 %v962, 0.2
        %v1027 = vmul.f32 %v963, 0.2
        %v1028 = vmul.f32 %v964, 0.2
        %v1029 = vmul.f32 %v965, 0.2
        %v1030 = vmul.f32 %v966, 0.2
        %v1031 = vmul.f32 %v967, 0.2
        %v1032 = vmul.f32 %v968, 0.2
        %v1033 = vmul.f32 %v969, 0.2
        %v1034 = vmul.f32 %v970, 0.2
        %v1035 = vmul.f32 %v971, 0.2
        %v1036 = vmul.f32 %v972, 0.2
        %v1037 = vmul.f32 %v973, 0.2
        %v1038 = vmul.f32 %v974, 0.2
        %v1039 = vmul.f32 %v975, 0.2
        %v1040 = vmul.f32 %v976, 0.2
        %v1041 = vmax.f32 %v913, %v977
        %v1042 = vmax.f32 %v914, %v978
        %v1043 = vmax.f32 %v915, %v979
        %v1044 = vmax.f32 %v916, %v980
        %v1045 = vmax.f32 %v917, %v981
        %v1046 = vmax.f32 %v918, %v982
        %v1047 = vmax.f32 %v919, %v983
        %v1048 = vmax.f32 %v920, %v984
        %v1049 = vmax.f32 %v921, %v985
        %v1050 = vmax.f32 %v922, %v986
        %v1051 = vmax.f32 %v923, %v987
        %v1052 = vmax.f32 %v924, %v988
        %v1053 = vmax.f32 %v925, %v989
        %v1054 = vmax.f32 %v926, %v990
        %v1055 = vmax.f32 %v927, %v991
        %v1056 = vmax.f32 %v928, %v992
        %v1057 = vmax.f32 %v929, %v993
        %v1058 = vmax.f32 %v930, %v994
        %v1059 = vmax.f32 %v931, %v995
        %v1060 = vmax.f32 %v932, %v996
        %v1061 = vmax.f32 %v933, %v997
        %v1062 = vmax.f32 %v934, %v998
        %v1063 = vmax.f32 %v935, %v999
        %v1064 = vmax.f32 %v936, %v1000
        %v1065 = vmax.f32 %v937, %v1001
        %v1066 = vmax.f32 %v938, %v1002
        %v1067 = vmax.f32 %v939, %v1003
        %v1068 = vmax.f32 %v940, %v1004
        %v1069 = vmax.f32 %v941, %v1005
        %v1070 = vmax.f32 %v942, %v1006
        %v1071 = vmax.f32 %v943, %v1007
        %v1072 = vmax.f32 %v944, %v1008
        %v1073 = vmax.f32 %v945, %v1009
        %v1074 = vmax.f32 %v946, %v1010
        %v1075 = vmax.f32 %v947, %v1011
        %v1076 = vmax.f32 %v948, %v1012
        %v1077 = vmax.f32 %v949, %v1013
        %v1078 = vmax.f32 %v950, %v1014
        %v1079 = vmax.f32 %v951, %v1015
        %v1080 = vmax.f32 %v952, %v1016
        %v1081 = vmax.f32 %v953, %v1017
        %v1082 = vmax.f32 %v954, %v1018
        %v1083 = vmax.f32 %v955, %v1019
        %v1084 = vmax.f32 %v956, %v1020
        %v1085 = vmax.f32 %v957, %v1021
        %v1086 = vmax.f32 %v958, %v1022
        %v1087 = vmax.f32 %v959, %v1023
        %v1088 = vmax.f32 %v960, %v1024
        %v1089 = vmax.f32 %v961, %v1025
        %v1090 = vmax.f32 %v962, %v1026
        %v1091 = vmax.f32 %v963, %v1027
        %v1092 = vmax.f32 %v964, %v1028
        %v1093 = vmax.f32 %v965, %v1029
        %v1094 = vmax.f32 %v966, %v1030
        %v1095 = vmax.f32 %v967, %v1031
        %v1096 = vmax.f32 %v968, %v1032
        %v1097 = vmax.f32 %v969, %v1033
        %v1098 = vmax.f32 %v970, %v1034
        %v1099 = vmax.f32 %v971, %v1035
        %v1100 = vmax.f32 %v972, %v1036
        %v1101 = vmax.f32 %v973, %v1037
        %v1102 = vmax.f32 %v974, %v1038
        %v1103 = vmax.f32 %v975, %v1039
        %v1104 = vmax.f32 %v976, %v1040
        %v1105 = vld [vmem:[#allocation6] sm:$0xff]
        %v1106 = vld [vmem:[#allocation6 + $0x8] sm:$0xff]
        %v1107 = vld [vmem:[#allocation6 + $0x10] sm:$0xff]
        %v1108 = vld [vmem:[#allocation6 + $0x18] sm:$0xff]
        %v1109 = vld [vmem:[#allocation6 + $0x20] sm:$0xff]
        %v1110 = vld [vmem:[#allocation6 + $0x28] sm:$0xff]
        %v1111 = vld [vmem:[#allocation6 + $0x30] sm:$0xff]
        %v1112 = vld [vmem:[#allocation6 + $0x38] sm:$0xff]
        %v1113 = vld [vmem:[#allocation6 + $0x40] sm:$0xff]
        %v1114 = vld [vmem:[#allocation6 + $0x48] sm:$0xff]
        %v1115 = vld [vmem:[#allocation6 + $0x50] sm:$0xff]
        %v1116 = vld [vmem:[#allocation6 + $0x58] sm:$0xff]
        %v1117 = vld [vmem:[#allocation6 + $0x60] sm:$0xff]
        %v1118 = vld [vmem:[#allocation6 + $0x68] sm:$0xff]
        %v1119 = vld [vmem:[#allocation6 + $0x70] sm:$0xff]
        %v1120 = vld [vmem:[#allocation6 + $0x78] sm:$0xff]
        %v1121 = vld [vmem:[#allocation6 + $0x80] sm:$0xff]
        %v1122 = vld [vmem:[#allocation6 + $0x88] sm:$0xff]
        %v1123 = vld [vmem:[#allocation6 + $0x90] sm:$0xff]
        %v1124 = vld [vmem:[#allocation6 + $0x98] sm:$0xff]
        %v1125 = vld [vmem:[#allocation6 + $0xa0] sm:$0xff]
        %v1126 = vld [vmem:[#allocation6 + $0xa8] sm:$0xff]
        %v1127 = vld [vmem:[#allocation6 + $0xb0] sm:$0xff]
        %v1128 = vld [vmem:[#allocation6 + $0xb8] sm:$0xff]
        %v1129 = vld [vmem:[#allocation6 + $0xc0] sm:$0xff]
        %v1130 = vld [vmem:[#allocation6 + $0xc8] sm:$0xff]
        %v1131 = vld [vmem:[#allocation6 + $0xd0] sm:$0xff]
        %v1132 = vld [vmem:[#allocation6 + $0xd8] sm:$0xff]
        %v1133 = vld [vmem:[#allocation6 + $0xe0] sm:$0xff]
        %v1134 = vld [vmem:[#allocation6 + $0xe8] sm:$0xff]
        %v1135 = vld [vmem:[#allocation6 + $0xf0] sm:$0xff]
        %v1136 = vld [vmem:[#allocation6 + $0xf8] sm:$0xff]
        %v1137 = vld [vmem:[#allocation6 + $0x100] sm:$0xff]
        %v1138 = vld [vmem:[#allocation6 + $0x108] sm:$0xff]
        %v1139 = vld [vmem:[#allocation6 + $0x110] sm:$0xff]
        %v1140 = vld [vmem:[#allocation6 + $0x118] sm:$0xff]
        %v1141 = vld [vmem:[#allocation6 + $0x120] sm:$0xff]
        %v1142 = vld [vmem:[#allocation6 + $0x128] sm:$0xff]
        %v1143 = vld [vmem:[#allocation6 + $0x130] sm:$0xff]
        %v1144 = vld [vmem:[#allocation6 + $0x138] sm:$0xff]
        %v1145 = vld [vmem:[#allocation6 + $0x140] sm:$0xff]
        %v1146 = vld [vmem:[#allocation6 + $0x148] sm:$0xff]
        %v1147 = vld [vmem:[#allocation6 + $0x150] sm:$0xff]
        %v1148 = vld [vmem:[#allocation6 + $0x158] sm:$0xff]
        %v1149 = vld [vmem:[#allocation6 + $0x160] sm:$0xff]
        %v1150 = vld [vmem:[#allocation6 + $0x168] sm:$0xff]
        %v1151 = vld [vmem:[#allocation6 + $0x170] sm:$0xff]
        %v1152 = vld [vmem:[#allocation6 + $0x178] sm:$0xff]
        %v1153 = vld [vmem:[#allocation6 + $0x180] sm:$0xff]
        %v1154 = vld [vmem:[#allocation6 + $0x188] sm:$0xff]
        %v1155 = vld [vmem:[#allocation6 + $0x190] sm:$0xff]
        %v1156 = vld [vmem:[#allocation6 + $0x198] sm:$0xff]
        %v1157 = vld [vmem:[#allocation6 + $0x1a0] sm:$0xff]
        %v1158 = vld [vmem:[#allocation6 + $0x1a8] sm:$0xff]
        %v1159 = vld [vmem:[#allocation6 + $0x1b0] sm:$0xff]
        %v1160 = vld [vmem:[#allocation6 + $0x1b8] sm:$0xff]
        %v1161 = vld [vmem:[#allocation6 + $0x1c0] sm:$0xff]
        %v1162 = vld [vmem:[#allocation6 + $0x1c8] sm:$0xff]
        %v1163 = vld [vmem:[#allocation6 + $0x1d0] sm:$0xff]
        %v1164 = vld [vmem:[#allocation6 + $0x1d8] sm:$0xff]
        %v1165 = vld [vmem:[#allocation6 + $0x1e0] sm:$0xff]
        %v1166 = vld [vmem:[#allocation6 + $0x1e8] sm:$0xff]
        %v1167 = vld [vmem:[#allocation6 + $0x1f0] sm:$0xff]
        %v1168 = vld [vmem:[#allocation6 + $0x1f8] sm:$0xff]
        %v1169 = vadd.f32 %v1041, %v1105
        %v1170 = vadd.f32 %v1042, %v1106
        %v1171 = vadd.f32 %v1043, %v1107
        %v1172 = vadd.f32 %v1044, %v1108
        %v1173 = vadd.f32 %v1045, %v1109
        %v1174 = vadd.f32 %v1046, %v1110
        %v1175 = vadd.f32 %v1047, %v1111
        %v1176 = vadd.f32 %v1048, %v1112
        %v1177 = vadd.f32 %v1049, %v1113
        %v1178 = vadd.f32 %v1050, %v1114
        %v1179 = vadd.f32 %v1051, %v1115
        %v1180 = vadd.f32 %v1052, %v1116
        %v1181 = vadd.f32 %v1053, %v1117
        %v1182 = vadd.f32 %v1054, %v1118
        %v1183 = vadd.f32 %v1055, %v1119
        %v1184 = vadd.f32 %v1056, %v1120
        %v1185 = vadd.f32 %v1057, %v1121
        %v1186 = vadd.f32 %v1058, %v1122
        %v1187 = vadd.f32 %v1059, %v1123
        %v1188 = vadd.f32 %v1060, %v1124
        %v1189 = vadd.f32 %v1061, %v1125
        %v1190 = vadd.f32 %v1062, %v1126
        %v1191 = vadd.f32 %v1063, %v1127
        %v1192 = vadd.f32 %v1064, %v1128
        %v1193 = vadd.f32 %v1065, %v1129
        %v1194 = vadd.f32 %v1066, %v1130
        %v1195 = vadd.f32 %v1067, %v1131
        %v1196 = vadd.f32 %v1068, %v1132
        %v1197 = vadd.f32 %v1069, %v1133
        %v1198 = vadd.f32 %v1070, %v1134
        %v1199 = vadd.f32 %v1071, %v1135
        %v1200 = vadd.f32 %v1072, %v1136
        %v1201 = vadd.f32 %v1073, %v1137
        %v1202 = vadd.f32 %v1074, %v1138
        %v1203 = vadd.f32 %v1075, %v1139
        %v1204 = vadd.f32 %v1076, %v1140
        %v1205 = vadd.f32 %v1077, %v1141
        %v1206 = vadd.f32 %v1078, %v1142
        %v1207 = vadd.f32 %v1079, %v1143
        %v1208 = vadd.f32 %v1080, %v1144
        %v1209 = vadd.f32 %v1081, %v1145
        %v1210 = vadd.f32 %v1082, %v1146
        %v1211 = vadd.f32 %v1083, %v1147
        %v1212 = vadd.f32 %v1084, %v1148
        %v1213 = vadd.f32 %v1085, %v1149
        %v1214 = vadd.f32 %v1086, %v1150
        %v1215 = vadd.f32 %v1087, %v1151
        %v1216 = vadd.f32 %v1088, %v1152
        %v1217 = vadd.f32 %v1089, %v1153
        %v1218 = vadd.f32 %v1090, %v1154
        %v1219 = vadd.f32 %v1091, %v1155
        %v1220 = vadd.f32 %v1092, %v1156
        %v1221 = vadd.f32 %v1093, %v1157
        %v1222 = vadd.f32 %v1094, %v1158
        %v1223 = vadd.f32 %v1095, %v1159
        %v1224 = vadd.f32 %v1096, %v1160
        %v1225 = vadd.f32 %v1097, %v1161
        %v1226 = vadd.f32 %v1098, %v1162
        %v1227 = vadd.f32 %v1099, %v1163
        %v1228 = vadd.f32 %v1100, %v1164
        %v1229 = vadd.f32 %v1101, %v1165
        %v1230 = vadd.f32 %v1102, %v1166
        %v1231 = vadd.f32 %v1103, %v1167
        %v1232 = vadd.f32 %v1104, %v1168
        %v1233 = vmax.f32 %v1169, %v1170
        %1234 = vmax.xlane.f32.xlu0 %v1233
        %v1235 = vpop.xlane.xlu0 %1234
        %v1236 = vmax.f32 %v1171, %v1172
        %1237 = vmax.xlane.f32.xlu0 %v1236
        %v1238 = vpop.xlane.xlu0 %1237
        %v1239 = vmax.f32 %v1173, %v1174
        %1240 = vmax.xlane.f32.xlu0 %v1239
        %v1241 = vpop.xlane.xlu0 %1240
        %v1242 = vmax.f32 %v1175, %v1176
        %1243 = vmax.xlane.f32.xlu0 %v1242
        %v1244 = vpop.xlane.xlu0 %1243
        %v1245 = vmax.f32 %v1177, %v1178
        %1246 = vmax.xlane.f32.xlu0 %v1245
        %v1247 = vpop.xlane.xlu0 %1246
        %v1248 = vmax.f32 %v1179, %v1180
        %1249 = vmax.xlane.f32.xlu0 %v1248
        %v1250 = vpop.xlane.xlu0 %1249
        %v1251 = vmax.f32 %v1181, %v1182
        %1252 = vmax.xlane.f32.xlu0 %v1251
        %v1253 = vpop.xlane.xlu0 %1252
        %v1254 = vmax.f32 %v1183, %v1184
        %1255 = vmax.xlane.f32.xlu0 %v1254
        %v1256 = vpop.xlane.xlu0 %1255
        %v1257 = vmax.f32 %v1185, %v1186
        %1258 = vmax.xlane.f32.xlu0 %v1257
        %v1259 = vpop.xlane.xlu0 %1258
        %v1260 = vmax.f32 %v1187, %v1188
        %1261 = vmax.xlane.f32.xlu0 %v1260
        %v1262 = vpop.xlane.xlu0 %1261
        %v1263 = vmax.f32 %v1189, %v1190
        %1264 = vmax.xlane.f32.xlu0 %v1263
        %v1265 = vpop.xlane.xlu0 %1264
        %v1266 = vmax.f32 %v1191, %v1192
        %1267 = vmax.xlane.f32.xlu0 %v1266
        %v1268 = vpop.xlane.xlu0 %1267
        %v1269 = vmax.f32 %v1193, %v1194
        %1270 = vmax.xlane.f32.xlu0 %v1269
        %v1271 = vpop.xlane.xlu0 %1270
        %v1272 = vmax.f32 %v1195, %v1196
        %1273 = vmax.xlane.f32.xlu0 %v1272
        %v1274 = vpop.xlane.xlu0 %1273
        %v1275 = vmax.f32 %v1197, %v1198
        %1276 = vmax.xlane.f32.xlu0 %v1275
        %v1277 = vpop.xlane.xlu0 %1276
        %v1278 = vmax.f32 %v1199, %v1200
        %1279 = vmax.xlane.f32.xlu0 %v1278
        %v1280 = vpop.xlane.xlu0 %1279
        %v1281 = vmax.f32 %v1201, %v1202
        %1282 = vmax.xlane.f32.xlu0 %v1281
        %v1283 = vpop.xlane.xlu0 %1282
        %v1284 = vmax.f32 %v1203, %v1204
        %1285 = vmax.xlane.f32.xlu0 %v1284
        %v1286 = vpop.xlane.xlu0 %1285
        %v1287 = vmax.f32 %v1205, %v1206
        %1288 = vmax.xlane.f32.xlu0 %v1287
        %v1289 = vpop.xlane.xlu0 %1288
        %v1290 = vmax.f32 %v1207, %v1208
        %1291 = vmax.xlane.f32.xlu0 %v1290
        %v1292 = vpop.xlane.xlu0 %1291
        %v1293 = vmax.f32 %v1209, %v1210
        %1294 = vmax.xlane.f32.xlu0 %v1293
        %v1295 = vpop.xlane.xlu0 %1294
        %v1296 = vmax.f32 %v1211, %v1212
        %1297 = vmax.xlane.f32.xlu0 %v1296
        %v1298 = vpop.xlane.xlu0 %1297
        %v1299 = vmax.f32 %v1213, %v1214
        %1300 = vmax.xlane.f32.xlu0 %v1299
        %v1301 = vpop.xlane.xlu0 %1300
        %v1302 = vmax.f32 %v1215, %v1216
        %1303 = vmax.xlane.f32.xlu0 %v1302
        %v1304 = vpop.xlane.xlu0 %1303
        %v1305 = vmax.f32 %v1217, %v1218
        %1306 = vmax.xlane.f32.xlu0 %v1305
        %v1307 = vpop.xlane.xlu0 %1306
        %v1308 = vmax.f32 %v1219, %v1220
        %1309 = vmax.xlane.f32.xlu0 %v1308
        %v1310 = vpop.xlane.xlu0 %1309
        %v1311 = vmax.f32 %v1221, %v1222
        %1312 = vmax.xlane.f32.xlu0 %v1311
        %v1313 = vpop.xlane.xlu0 %1312
        %v1314 = vmax.f32 %v1223, %v1224
        %1315 = vmax.xlane.f32.xlu0 %v1314
        %v1316 = vpop.xlane.xlu0 %1315
        %v1317 = vmax.f32 %v1225, %v1226
        %1318 = vmax.xlane.f32.xlu0 %v1317
        %v1319 = vpop.xlane.xlu0 %1318
        %v1320 = vmax.f32 %v1227, %v1228
        %1321 = vmax.xlane.f32.xlu0 %v1320
        %v1322 = vpop.xlane.xlu0 %1321
        %v1323 = vmax.f32 %v1229, %v1230
        %1324 = vmax.xlane.f32.xlu0 %v1323
        %v1325 = vpop.xlane.xlu0 %1324
        %v1326 = vmax.f32 %v1231, %v1232
        %1327 = vmax.xlane.f32.xlu0 %v1326
        %v1328 = vpop.xlane.xlu0 %1327
        %v1329 = vsub.f32 %v1169, %v1235
        %v1330 = vsub.f32 %v1170, %v1235
        %v1331 = vsub.f32 %v1171, %v1238
        %v1332 = vsub.f32 %v1172, %v1238
        %v1333 = vsub.f32 %v1173, %v1241
        %v1334 = vsub.f32 %v1174, %v1241
        %v1335 = vsub.f32 %v1175, %v1244
        %v1336 = vsub.f32 %v1176, %v1244
        %v1337 = vsub.f32 %v1177, %v1247
        %v1338 = vsub.f32 %v1178, %v1247
        %v1339 = vsub.f32 %v1179, %v1250
        %v1340 = vsub.f32 %v1180, %v1250
        %v1341 = vsub.f32 %v1181, %v1253
        %v1342 = vsub.f32 %v1182, %v1253
        %v1343 = vsub.f32 %v1183, %v1256
        %v1344 = vsub.f32 %v1184, %v1256
        %v1345 = vsub.f32 %v1185, %v1259
        %v1346 = vsub.f32 %v1186, %v1259
        %v1347 = vsub.f32 %v1187, %v1262
        %v1348 = vsub.f32 %v1188, %v1262
        %v1349 = vsub.f32 %v1189, %v1265
        %v1350 = vsub.f32 %v1190, %v1265
        %v1351 = vsub.f32 %v1191, %v1268
        %v1352 = vsub.f32 %v1192, %v1268
        %v1353 = vsub.f32 %v1193, %v1271
        %v1354 = vsub.f32 %v1194, %v1271
        %v1355 = vsub.f32 %v1195, %v1274
        %v1356 = vsub.f32 %v1196, %v1274
        %v1357 = vsub.f32 %v1197, %v1277
        %v1358 = vsub.f32 %v1198, %v1277
        %v1359 = vsub.f32 %v1199, %v1280
        %v1360 = vsub.f32 %v1200, %v1280
        %v1361 = vsub.f32 %v1201, %v1283
        %v1362 = vsub.f32 %v1202, %v1283
        %v1363 = vsub.f32 %v1203, %v1286
        %v1364 = vsub.f32 %v1204, %v1286
        %v1365 = vsub.f32 %v1205, %v1289
        %v1366 = vsub.f32 %v1206, %v1289
        %v1367 = vsub.f32 %v1207, %v1292
        %v1368 = vsub.f32 %v1208, %v1292
        %v1369 = vsub.f32 %v1209, %v1295
        %v1370 = vsub.f32 %v1210, %v1295
        %v1371 = vsub.f32 %v1211, %v1298
        %v1372 = vsub.f32 %v1212, %v1298
        %v1373 = vsub.f32 %v1213, %v1301
        %v1374 = vsub.f32 %v1214, %v1301
        %v1375 = vsub.f32 %v1215, %v1304
        %v1376 = vsub.f32 %v1216, %v1304
        %v1377 = vsub.f32 %v1217, %v1307
        %v1378 = vsub.f32 %v1218, %v1307
        %v1379 = vsub.f32 %v1219, %v1310
        %v1380 = vsub.f32 %v1220, %v1310
        %v1381 = vsub.f32 %v1221, %v1313
        %v1382 = vsub.f32 %v1222, %v1313
        %v1383 = vsub.f32 %v1223, %v1316
        %v1384 = vsub.f32 %v1224, %v1316
        %v1385 = vsub.f32 %v1225, %v1319
        %v1386 = vsub.f32 %v1226, %v1319
        %v1387 = vsub.f32 %v1227, %v1322
        %v1388 = vsub.f32 %v1228, %v1322
        %v1389 = vsub.f32 %v1229, %v1325
        %v1390 = vsub.f32 %v1230, %v1325
        %v1391 = vsub.f32 %v1231, %v1328
        %v1392 = vsub.f32 %v1232, %v1328
        %v1393 = vmul.f32 %v1329, 1.442695
        %v1394 = vpow.pop %v1393
        %v1395 = vmul.f32 %v1330, 1.442695
        %v1396 = vpow.pop %v1395
        %v1397 = vmul.f32 %v1331, 1.442695
        %v1398 = vpow.pop %v1397
        %v1399 = vmul.f32 %v1332, 1.442695
        %v1400 = vpow.pop %v1399
        %v1401 = vmul.f32 %v1333, 1.442695
        %v1402 = vpow.pop %v1401
        %v1403 = vmul.f32 %v1334, 1.442695
        %v1404 = vpow.pop %v1403
        %v1405 = vmul.f32 %v1335, 1.442695
        %v1406 = vpow.pop %v1405
        %v1407 = vmul.f32 %v1336, 1.442695
        %v1408 = vpow.pop %v1407
        %v1409 = vmul.f32 %v1337, 1.442695
        %v1410 = vpow.pop %v1409
        %v1411 = vmul.f32 %v1338, 1.442695
        %v1412 = vpow.pop %v1411
        %v1413 = vmul.f32 %v1339, 1.442695
        %v1414 = vpow.pop %v1413
        %v1415 = vmul.f32 %v1340, 1.442695
        %v1416 = vpow.pop %v1415
        %v1417 = vmul.f32 %v1341, 1.442695
        %v1418 = vpow.pop %v1417
        %v1419 = vmul.f32 %v1342, 1.442695
        %v1420 = vpow.pop %v1419
        %v1421 = vmul.f32 %v1343, 1.442695
        %v1422 = vpow.pop %v1421
        %v1423 = vmul.f32 %v1344, 1.442695
        %v1424 = vpow.pop %v1423
        %v1425 = vmul.f32 %v1345, 1.442695
        %v1426 = vpow.pop %v1425
        %v1427 = vmul.f32 %v1346, 1.442695
        %v1428 = vpow.pop %v1427
        %v1429 = vmul.f32 %v1347, 1.442695
        %v1430 = vpow.pop %v1429
        %v1431 = vmul.f32 %v1348, 1.442695
        %v1432 = vpow.pop %v1431
        %v1433 = vmul.f32 %v1349, 1.442695
        %v1434 = vpow.pop %v1433
        %v1435 = vmul.f32 %v1350, 1.442695
        %v1436 = vpow.pop %v1435
        %v1437 = vmul.f32 %v1351, 1.442695
        %v1438 = vpow.pop %v1437
        %v1439 = vmul.f32 %v1352, 1.442695
        %v1440 = vpow.pop %v1439
        %v1441 = vmul.f32 %v1353, 1.442695
        %v1442 = vpow.pop %v1441
        %v1443 = vmul.f32 %v1354, 1.442695
        %v1444 = vpow.pop %v1443
        %v1445 = vmul.f32 %v1355, 1.442695
        %v1446 = vpow.pop %v1445
        %v1447 = vmul.f32 %v1356, 1.442695
        %v1448 = vpow.pop %v1447
        %v1449 = vmul.f32 %v1357, 1.442695
        %v1450 = vpow.pop %v1449
        %v1451 = vmul.f32 %v1358, 1.442695
        %v1452 = vpow.pop %v1451
        %v1453 = vmul.f32 %v1359, 1.442695
        %v1454 = vpow.pop %v1453
        %v1455 = vmul.f32 %v1360, 1.442695
        %v1456 = vpow.pop %v1455
        %v1457 = vmul.f32 %v1361, 1.442695
        %v1458 = vpow.pop %v1457
        %v1459 = vmul.f32 %v1362, 1.442695
        %v1460 = vpow.pop %v1459
        %v1461 = vmul.f32 %v1363, 1.442695
        %v1462 = vpow.pop %v1461
        %v1463 = vmul.f32 %v1364, 1.442695
        %v1464 = vpow.pop %v1463
        %v1465 = vmul.f32 %v1365, 1.442695
        %v1466 = vpow.pop %v1465
        %v1467 = vmul.f32 %v1366, 1.442695
        %v1468 = vpow.pop %v1467
        %v1469 = vmul.f32 %v1367, 1.442695
        %v1470 = vpow.pop %v1469
        %v1471 = vmul.f32 %v1368, 1.442695
        %v1472 = vpow.pop %v1471
        %v1473 = vmul.f32 %v1369, 1.442695
        %v1474 = vpow.pop %v1473
        %v1475 = vmul.f32 %v1370, 1.442695
        %v1476 = vpow.pop %v1475
        %v1477 = vmul.f32 %v1371, 1.442695
        %v1478 = vpow.pop %v1477
        %v1479 = vmul.f32 %v1372, 1.442695
        %v1480 = vpow.pop %v1479
        %v1481 = vmul.f32 %v1373, 1.442695
        %v1482 = vpow.pop %v1481
        %v1483 = vmul.f32 %v1374, 1.442695
        %v1484 = vpow.pop %v1483
        %v1485 = vmul.f32 %v1375, 1.442695
        %v1486 = vpow.pop %v1485
        %v1487 = vmul.f32 %v1376, 1.442695
        %v1488 = vpow.pop %v1487
        %v1489 = vmul.f32 %v1377, 1.442695
        %v1490 = vpow.pop %v1489
        %v1491 = vmul.f32 %v1378, 1.442695
        %v1492 = vpow.pop %v1491
        %v1493 = vmul.f32 %v1379, 1.442695
        %v1494 = vpow.pop %v1493
        %v1495 = vmul.f32 %v1380, 1.442695
        %v1496 = vpow.pop %v1495
        %v1497 = vmul.f32 %v1381, 1.442695
        %v1498 = vpow.pop %v1497
        %v1499 = vmul.f32 %v1382, 1.442695
        %v1500 = vpow.pop %v1499
        %v1501 = vmul.f32 %v1383, 1.442695
        %v1502 = vpow.pop %v1501
        %v1503 = vmul.f32 %v1384, 1.442695
        %v1504 = vpow.pop %v1503
        %v1505 = vmul.f32 %v1385, 1.442695
        %v1506 = vpow.pop %v1505
        %v1507 = vmul.f32 %v1386, 1.442695
        %v1508 = vpow.pop %v1507
        %v1509 = vmul.f32 %v1387, 1.442695
        %v1510 = vpow.pop %v1509
        %v1511 = vmul.f32 %v1388, 1.442695
        %v1512 = vpow.pop %v1511
        %v1513 = vmul.f32 %v1389, 1.442695
        %v1514 = vpow.pop %v1513
        %v1515 = vmul.f32 %v1390, 1.442695
        %v1516 = vpow.pop %v1515
        %v1517 = vmul.f32 %v1391, 1.442695
        %v1518 = vpow.pop %v1517
        %v1519 = vmul.f32 %v1392, 1.442695
        %v1520 = vpow.pop %v1519
        %v1521 = vadd.f32 %v1394, %v1396
        %1522 = vadd.xlane.f32.xlu0 %v1521
        %v1523 = vpop.xlane.xlu0 %1522
        %v1524 = vadd.f32 %v1398, %v1400
        %1525 = vadd.xlane.f32.xlu0 %v1524
        %v1526 = vpop.xlane.xlu0 %1525
        %v1527 = vadd.f32 %v1402, %v1404
        %1528 = vadd.xlane.f32.xlu0 %v1527
        %v1529 = vpop.xlane.xlu0 %1528
        %v1530 = vadd.f32 %v1406, %v1408
        %1531 = vadd.xlane.f32.xlu0 %v1530
        %v1532 = vpop.xlane.xlu0 %1531
        %v1533 = vadd.f32 %v1410, %v1412
        %1534 = vadd.xlane.f32.xlu0 %v1533
        %v1535 = vpop.xlane.xlu0 %1534
        %v1536 = vadd.f32 %v1414, %v1416
        %1537 = vadd.xlane.f32.xlu0 %v1536
        %v1538 = vpop.xlane.xlu0 %1537
        %v1539 = vadd.f32 %v1418, %v1420
        %1540 = vadd.xlane.f32.xlu0 %v1539
        %v1541 = vpop.xlane.xlu0 %1540
        %v1542 = vadd.f32 %v1422, %v1424
        %1543 = vadd.xlane.f32.xlu0 %v1542
        %v1544 = vpop.xlane.xlu0 %1543
        %v1545 = vadd.f32 %v1426, %v1428
        %1546 = vadd.xlane.f32.xlu0 %v1545
        %v1547 = vpop.xlane.xlu0 %1546
        %v1548 = vadd.f32 %v1430, %v1432
        %1549 = vadd.xlane.f32.xlu0 %v1548
        %v1550 = vpop.xlane.xlu0 %1549
        %v1551 = vadd.f32 %v1434, %v1436
        %1552 = vadd.xlane.f32.xlu0 %v1551
        %v1553 = vpop.xlane.xlu0 %1552
        %v1554 = vadd.f32 %v1438, %v1440
        %1555 = vadd.xlane.f32.xlu0 %v1554
        %v1556 = vpop.xlane.xlu0 %1555
        %v1557 = vadd.f32 %v1442, %v1444
        %1558 = vadd.xlane.f32.xlu0 %v1557
        %v1559 = vpop.xlane.xlu0 %1558
        %v1560 = vadd.f32 %v1446, %v1448
        %1561 = vadd.xlane.f32.xlu0 %v1560
        %v1562 = vpop.xlane.xlu0 %1561
        %v1563 = vadd.f32 %v1450, %v1452
        %1564 = vadd.xlane.f32.xlu0 %v1563
        %v1565 = vpop.xlane.xlu0 %1564
        %v1566 = vadd.f32 %v1454, %v1456
        %1567 = vadd.xlane.f32.xlu0 %v1566
        %v1568 = vpop.xlane.xlu0 %1567
        %v1569 = vadd.f32 %v1458, %v1460
        %1570 = vadd.xlane.f32.xlu0 %v1569
        %v1571 = vpop.xlane.xlu0 %1570
        %v1572 = vadd.f32 %v1462, %v1464
        %1573 = vadd.xlane.f32.xlu0 %v1572
        %v1574 = vpop.xlane.xlu0 %1573
        %v1575 = vadd.f32 %v1466, %v1468
        %1576 = vadd.xlane.f32.xlu0 %v1575
        %v1577 = vpop.xlane.xlu0 %1576
        %v1578 = vadd.f32 %v1470, %v1472
        %1579 = vadd.xlane.f32.xlu0 %v1578
        %v1580 = vpop.xlane.xlu0 %1579
        %v1581 = vadd.f32 %v1474, %v1476
        %1582 = vadd.xlane.f32.xlu0 %v1581
        %v1583 = vpop.xlane.xlu0 %1582
        %v1584 = vadd.f32 %v1478, %v1480
        %1585 = vadd.xlane.f32.xlu0 %v1584
        %v1586 = vpop.xlane.xlu0 %1585
        %v1587 = vadd.f32 %v1482, %v1484
        %1588 = vadd.xlane.f32.xlu0 %v1587
        %v1589 = vpop.xlane.xlu0 %1588
        %v1590 = vadd.f32 %v1486, %v1488
        %1591 = vadd.xlane.f32.xlu0 %v1590
        %v1592 = vpop.xlane.xlu0 %1591
        %v1593 = vadd.f32 %v1490, %v1492
        %1594 = vadd.xlane.f32.xlu0 %v1593
        %v1595 = vpop.xlane.xlu0 %1594
        %v1596 = vadd.f32 %v1494, %v1496
        %1597 = vadd.xlane.f32.xlu0 %v1596
        %v1598 = vpop.xlane.xlu0 %1597
        %v1599 = vadd.f32 %v1498, %v1500
        %1600 = vadd.xlane.f32.xlu0 %v1599
        %v1601 = vpop.xlane.xlu0 %1600
        %v1602 = vadd.f32 %v1502, %v1504
        %1603 = vadd.xlane.f32.xlu0 %v1602
        %v1604 = vpop.xlane.xlu0 %1603
        %v1605 = vadd.f32 %v1506, %v1508
        %1606 = vadd.xlane.f32.xlu0 %v1605
        %v1607 = vpop.xlane.xlu0 %1606
        %v1608 = vadd.f32 %v1510, %v1512
        %1609 = vadd.xlane.f32.xlu0 %v1608
        %v1610 = vpop.xlane.xlu0 %1609
        %v1611 = vadd.f32 %v1514, %v1516
        %1612 = vadd.xlane.f32.xlu0 %v1611
        %v1613 = vpop.xlane.xlu0 %1612
        %v1614 = vadd.f32 %v1518, %v1520
        %1615 = vadd.xlane.f32.xlu0 %v1614
        %v1616 = vpop.xlane.xlu0 %1615
        %v1617 = vpack.c.bf16 %v1398, %v1394
        %v1618 = vpack.c.bf16 %v1400, %v1396
        %v1619 = vpack.c.bf16 %v1406, %v1402
        %v1620 = vpack.c.bf16 %v1408, %v1404
        %v1621 = vpack.c.bf16 %v1414, %v1410
        %v1622 = vpack.c.bf16 %v1416, %v1412
        %v1623 = vpack.c.bf16 %v1422, %v1418
        %v1624 = vpack.c.bf16 %v1424, %v1420
        %v1625 = vpack.c.bf16 %v1430, %v1426
        %v1626 = vpack.c.bf16 %v1432, %v1428
        %v1627 = vpack.c.bf16 %v1438, %v1434
        %v1628 = vpack.c.bf16 %v1440, %v1436
        %v1629 = vpack.c.bf16 %v1446, %v1442
        %v1630 = vpack.c.bf16 %v1448, %v1444
        %v1631 = vpack.c.bf16 %v1454, %v1450
        %v1632 = vpack.c.bf16 %v1456, %v1452
        %v1633 = vpack.c.bf16 %v1462, %v1458
        %v1634 = vpack.c.bf16 %v1464, %v1460
        %v1635 = vpack.c.bf16 %v1470, %v1466
        %v1636 = vpack.c.bf16 %v1472, %v1468
        %v1637 = vpack.c.bf16 %v1478, %v1474
        %v1638 = vpack.c.bf16 %v1480, %v1476
        %v1639 = vpack.c.bf16 %v1486, %v1482
        %v1640 = vpack.c.bf16 %v1488, %v1484
        %v1641 = vpack.c.bf16 %v1494, %v1490
        %v1642 = vpack.c.bf16 %v1496, %v1492
        %v1643 = vpack.c.bf16 %v1502, %v1498
        %v1644 = vpack.c.bf16 %v1504, %v1500
        %v1645 = vpack.c.bf16 %v1510, %v1506
        %v1646 = vpack.c.bf16 %v1512, %v1508
        %v1647 = vpack.c.bf16 %v1518, %v1514
        %v1648 = vpack.c.bf16 %v1520, %v1516
        %v1649 = vpack.c.bf16 %v580, %v577
        %v1650 = vpack.c.bf16 %v588, %v585
        %v1651 = vpack.c.bf16 %v596, %v593
        %v1652 = vpack.c.bf16 %v604, %v601
        %v1653 = vpack.c.bf16 %v612, %v609
        %v1654 = vpack.c.bf16 %v620, %v617
        %v1655 = vpack.c.bf16 %v628, %v625
        %v1656 = vpack.c.bf16 %v636, %v633
        %v1657 = vpack.c.bf16 %v644, %v641
        %v1658 = vpack.c.bf16 %v652, %v649
        %v1659 = vpack.c.bf16 %v660, %v657
        %v1660 = vpack.c.bf16 %v668, %v665
        %v1661 = vpack.c.bf16 %v676, %v673
        %v1662 = vpack.c.bf16 %v684, %v681
        %v1663 = vpack.c.bf16 %v692, %v689
        %v1664 = vpack.c.bf16 %v700, %v697
        %1665 = vmatprep.subr.bf16.mxu0 0
        %1666 = vmatpush1.bf16.msra.mxu0 %v1649
        %1667 = vmatprep.subr.bf16.mxu0 0
        %1668 = vmatpush1.bf16.msra.mxu0 %v1650
        %1669 = vmatprep.subr.bf16.mxu0 0
        %1670 = vmatpush1.bf16.msra.mxu0 %v1651
        %1671 = vmatprep.subr.bf16.mxu0 0
        %1672 = vmatpush1.bf16.msra.mxu0 %v1652
        %1673 = vmatprep.subr.bf16.mxu0 0
        %1674 = vmatpush1.bf16.msra.mxu0 %v1653
        %1675 = vmatprep.subr.bf16.mxu0 0
        %1676 = vmatpush1.bf16.msra.mxu0 %v1654
        %1677 = vmatprep.subr.bf16.mxu0 0
        %1678 = vmatpush1.bf16.msra.mxu0 %v1655
        %1679 = vmatprep.subr.bf16.mxu0 0
        %1680 = vmatpush1.bf16.msra.mxu0 %v1656
        %1681 = vmatprep.subr.bf16.mxu0 0
        %1682 = vmatpush1.bf16.msra.mxu0 %v1657
        %1683 = vmatprep.subr.bf16.mxu0 0
        %1684 = vmatpush1.bf16.msra.mxu0 %v1658
        %1685 = vmatprep.subr.bf16.mxu0 0
        %1686 = vmatpush1.bf16.msra.mxu0 %v1659
        %1687 = vmatprep.subr.bf16.mxu0 0
        %1688 = vmatpush1.bf16.msra.mxu0 %v1660
        %1689 = vmatprep.subr.bf16.mxu0 0
        %1690 = vmatpush1.bf16.msra.mxu0 %v1661
        %1691 = vmatprep.subr.bf16.mxu0 0
        %1692 = vmatpush1.bf16.msra.mxu0 %v1662
        %1693 = vmatprep.subr.bf16.mxu0 0
        %1694 = vmatpush1.bf16.msra.mxu0 %v1663
        %1695 = vmatprep.subr.bf16.mxu0 0
        %1696 = vmatpush1.bf16.msra.mxu0 %v1664
        %1697 = vmatprep.mubr.bf16.mxu0 %v1618
        %1698 = vmatmul.mubr.bf16.gmra.mrb[0].mxu0 %v1617
        %v1699 = vpop.f32.mrb[0].mxu0
        %v1700 = vadd.f32 0.0, %v1699
        %v1701 = vpop.f32.mrb[0].mxu0
        %v1702 = vpop.f32.mrb[0].mxu0
        %v1703 = vadd.f32 0.0, %v1702
        %v1704 = vpop.f32.mrb[0].mxu0
        %1705 = vmatprep.mubr.bf16.mxu0 %v1620
        %1706 = vmatmul.mubr.bf16.gmra.mrb[0].mxu0 %v1619
        %v1707 = vpop.f32.mrb[0].mxu0
        %v1708 = vadd.f32 0.0, %v1707
        %v1709 = vpop.f32.mrb[0].mxu0
        %v1710 = vpop.f32.mrb[0].mxu0
        %v1711 = vadd.f32 0.0, %v1710
        %v1712 = vpop.f32.mrb[0].mxu0
        %1713 = vmatprep.mubr.bf16.mxu0 %v1622
        %1714 = vmatmul.mubr.bf16.gmra.mrb[0].mxu0 %v1621
        %v1715 = vpop.f32.mrb[0].mxu0
        %v1716 = vadd.f32 0.0, %v1715
        %v1717 = vpop.f32.mrb[0].mxu0
        %v1718 = vpop.f32.mrb[0].mxu0
        %v1719 = vadd.f32 0.0, %v1718
        %v1720 = vpop.f32.mrb[0].mxu0
        %1721 = vmatprep.mubr.bf16.mxu0 %v1624
        %1722 = vmatmul.mubr.bf16.gmra.mrb[0].mxu0 %v1623
        %v1723 = vpop.f32.mrb[0].mxu0
        %v1724 = vadd.f32 0.0, %v1723
        %v1725 = vpop.f32.mrb[0].mxu0
        %v1726 = vpop.f32.mrb[0].mxu0
        %v1727 = vadd.f32 0.0, %v1726
        %v1728 = vpop.f32.mrb[0].mxu0
        %1729 = vmatprep.mubr.bf16.mxu0 %v1626
        %1730 = vmatmul.mubr.bf16.gmra.mrb[0].mxu0 %v1625
        %v1731 = vpop.f32.mrb[0].mxu0
        %v1732 = vadd.f32 0.0, %v1731
        %v1733 = vpop.f32.mrb[0].mxu0
        %v1734 = vpop.f32.mrb[0].mxu0
        %v1735 = vadd.f32 0.0, %v1734
        %v1736 = vpop.f32.mrb[0].mxu0
        %1737 = vmatprep.mubr.bf16.mxu0 %v1628
        %1738 = vmatmul.mubr.bf16.gmra.mrb[0].mxu0 %v1627
        %v1739 = vpop.f32.mrb[0].mxu0
        %v1740 = vadd.f32 0.0, %v1739
        %v1741 = vpop.f32.mrb[0].mxu0
        %v1742 = vpop.f32.mrb[0].mxu0
        %v1743 = vadd.f32 0.0, %v1742
        %v1744 = vpop.f32.mrb[0].mxu0
        %1745 = vmatprep.mubr.bf16.mxu0 %v1630
        %1746 = vmatmul.mubr.bf16.gmra.mrb[0].mxu0 %v1629
        %v1747 = vpop.f32.mrb[0].mxu0
        %v1748 = vadd.f32 0.0, %v1747
        %v1749 = vpop.f32.mrb[0].mxu0
        %v1750 = vpop.f32.mrb[0].mxu0
        %v1751 = vadd.f32 0.0, %v1750
        %v1752 = vpop.f32.mrb[0].mxu0
        %1753 = vmatprep.mubr.bf16.mxu0 %v1632
        %1754 = vmatmul.mubr.bf16.gmra.mrb[0].mxu0 %v1631
        %v1755 = vpop.f32.mrb[0].mxu0
        %v1756 = vadd.f32 0.0, %v1755
        %v1757 = vpop.f32.mrb[0].mxu0
        %v1758 = vpop.f32.mrb[0].mxu0
        %v1759 = vadd.f32 0.0, %v1758
        %v1760 = vpop.f32.mrb[0].mxu0
        %1761 = vmatprep.mubr.bf16.mxu0 %v1634
        %1762 = vmatmul.mubr.bf16.gmra.mrb[0].mxu0 %v1633
        %v1763 = vpop.f32.mrb[0].mxu0
        %v1764 = vadd.f32 0.0, %v1763
        %v1765 = vpop.f32.mrb[0].mxu0
        %v1766 = vpop.f32.mrb[0].mxu0
        %v1767 = vadd.f32 0.0, %v1766
        %v1768 = vpop.f32.mrb[0].mxu0
        %1769 = vmatprep.mubr.bf16.mxu0 %v1636
        %1770 = vmatmul.mubr.bf16.gmra.mrb[0].mxu0 %v1635
        %v1771 = vpop.f32.mrb[0].mxu0
        %v1772 = vadd.f32 0.0, %v1771
        %v1773 = vpop.f32.mrb[0].mxu0
        %v1774 = vpop.f32.mrb[0].mxu0
        %v1775 = vadd.f32 0.0, %v1774
        %v1776 = vpop.f32.mrb[0].mxu0
        %1777 = vmatprep.mubr.bf16.mxu0 %v1638
        %1778 = vmatmul.mubr.bf16.gmra.mrb[0].mxu0 %v1637
        %v1779 = vpop.f32.mrb[0].mxu0
        %v1780 = vadd.f32 0.0, %v1779
        %v1781 = vpop.f32.mrb[0].mxu0
        %v1782 = vpop.f32.mrb[0].mxu0
        %v1783 = vadd.f32 0.0, %v1782
        %v1784 = vpop.f32.mrb[0].mxu0
        %1785 = vmatprep.mubr.bf16.mxu0 %v1640
        %1786 = vmatmul.mubr.bf16.gmra.mrb[0].mxu0 %v1639
        %v1787 = vpop.f32.mrb[0].mxu0
        %v1788 = vadd.f32 0.0, %v1787
        %v1789 = vpop.f32.mrb[0].mxu0
        %v1790 = vpop.f32.mrb[0].mxu0
        %v1791 = vadd.f32 0.0, %v1790
        %v1792 = vpop.f32.mrb[0].mxu0
        %1793 = vmatprep.mubr.bf16.mxu0 %v1642
        %1794 = vmatmul.mubr.bf16.gmra.mrb[0].mxu0 %v1641
        %v1795 = vpop.f32.mrb[0].mxu0
        %v1796 = vadd.f32 0.0, %v1795
        %v1797 = vpop.f32.mrb[0].mxu0
        %v1798 = vpop.f32.mrb[0].mxu0
        %v1799 = vadd.f32 0.0, %v1798
        %v1800 = vpop.f32.mrb[0].mxu0
        %1801 = vmatprep.mubr.bf16.mxu0 %v1644
        %1802 = vmatmul.mubr.bf16.gmra.mrb[0].mxu0 %v1643
        %v1803 = vpop.f32.mrb[0].mxu0
        %v1804 = vadd.f32 0.0, %v1803
        %v1805 = vpop.f32.mrb[0].mxu0
        %v1806 = vpop.f32.mrb[0].mxu0
        %v1807 = vadd.f32 0.0, %v1806
        %v1808 = vpop.f32.mrb[0].mxu0
        %1809 = vmatprep.mubr.bf16.mxu0 %v1646
        %1810 = vmatmul.mubr.bf16.gmra.mrb[0].mxu0 %v1645
        %v1811 = vpop.f32.mrb[0].mxu0
        %v1812 = vadd.f32 0.0, %v1811
        %v1813 = vpop.f32.mrb[0].mxu0
        %v1814 = vpop.f32.mrb[0].mxu0
        %v1815 = vadd.f32 0.0, %v1814
        %v1816 = vpop.f32.mrb[0].mxu0
        %1817 = vmatprep.mubr.bf16.mxu0 %v1648
        %1818 = vmatmul.mubr.bf16.gmra.mrb[0].mxu0 %v1647
        %v1819 = vpop.f32.mrb[0].mxu0
        %v1820 = vadd.f32 0.0, %v1819
        %v1821 = vpop.f32.mrb[0].mxu0
        %v1822 = vpop.f32.mrb[0].mxu0
        %v1823 = vadd.f32 0.0, %v1822
        %v1824 = vpop.f32.mrb[0].mxu0
        %1825 = vdwg.mxu0
        %v1826 = vrcp.pop %v1523
        %v1827 = vrcp.pop %v1526
        %v1828 = vrcp.pop %v1529
        %v1829 = vrcp.pop %v1532
        %v1830 = vrcp.pop %v1535
        %v1831 = vrcp.pop %v1538
        %v1832 = vrcp.pop %v1541
        %v1833 = vrcp.pop %v1544
        %v1834 = vrcp.pop %v1547
        %v1835 = vrcp.pop %v1550
        %v1836 = vrcp.pop %v1553
        %v1837 = vrcp.pop %v1556
        %v1838 = vrcp.pop %v1559
        %v1839 = vrcp.pop %v1562
        %v1840 = vrcp.pop %v1565
        %v1841 = vrcp.pop %v1568
        %v1842 = vrcp.pop %v1571
        %v1843 = vrcp.pop %v1574
        %v1844 = vrcp.pop %v1577
        %v1845 = vrcp.pop %v1580
        %v1846 = vrcp.pop %v1583
        %v1847 = vrcp.pop %v1586
        %v1848 = vrcp.pop %v1589
        %v1849 = vrcp.pop %v1592
        %v1850 = vrcp.pop %v1595
        %v1851 = vrcp.pop %v1598
        %v1852 = vrcp.pop %v1601
        %v1853 = vrcp.pop %v1604
        %v1854 = vrcp.pop %v1607
        %v1855 = vrcp.pop %v1610
        %v1856 = vrcp.pop %v1613
        %v1857 = vrcp.pop %v1616
        %v1858 = vmul.f32 %v1700, %v1826
        %v1859 = vmul.f32 %v1703, %v1827
        %v1860 = vmul.f32 %v1708, %v1828
        %v1861 = vmul.f32 %v1711, %v1829
        %v1862 = vmul.f32 %v1716, %v1830
        %v1863 = vmul.f32 %v1719, %v1831
        %v1864 = vmul.f32 %v1724, %v1832
        %v1865 = vmul.f32 %v1727, %v1833
        %v1866 = vmul.f32 %v1732, %v1834
        %v1867 = vmul.f32 %v1735, %v1835
        %v1868 = vmul.f32 %v1740, %v1836
        %v1869 = vmul.f32 %v1743, %v1837
        %v1870 = vmul.f32 %v1748, %v1838
        %v1871 = vmul.f32 %v1751, %v1839
        %v1872 = vmul.f32 %v1756, %v1840
        %v1873 = vmul.f32 %v1759, %v1841
        %v1874 = vmul.f32 %v1764, %v1842
        %v1875 = vmul.f32 %v1767, %v1843
        %v1876 = vmul.f32 %v1772, %v1844
        %v1877 = vmul.f32 %v1775, %v1845
        %v1878 = vmul.f32 %v1780, %v1846
        %v1879 = vmul.f32 %v1783, %v1847
        %v1880 = vmul.f32 %v1788, %v1848
        %v1881 = vmul.f32 %v1791, %v1849
        %v1882 = vmul.f32 %v1796, %v1850
        %v1883 = vmul.f32 %v1799, %v1851
        %v1884 = vmul.f32 %v1804, %v1852
        %v1885 = vmul.f32 %v1807, %v1853
        %v1886 = vmul.f32 %v1812, %v1854
        %v1887 = vmul.f32 %v1815, %v1855
        %v1888 = vmul.f32 %v1820, %v1856
        %v1889 = vmul.f32 %v1823, %v1857
        %v1890 = vld [vmem:[%s312] sm:$0x1]
        %v1892 = vlaneseq
        %v1893 = vshrl.u32 %v1892, 7
        %v1894 = vsub.s32 0, %v1893
        %v1895 = vrot.slane %v1890, %v1894
        %v1897 = vadd.f32 %v1858, %v1895
        %v1898 = vadd.f32 %v1859, %v1895
        %v1899 = vadd.f32 %v1860, %v1895
        %v1900 = vadd.f32 %v1861, %v1895
        %v1901 = vadd.f32 %v1862, %v1895
        %v1902 = vadd.f32 %v1863, %v1895
        %v1903 = vadd.f32 %v1864, %v1895
        %v1904 = vadd.f32 %v1865, %v1895
        %v1905 = vadd.f32 %v1866, %v1895
        %v1906 = vadd.f32 %v1867, %v1895
        %v1907 = vadd.f32 %v1868, %v1895
        %v1908 = vadd.f32 %v1869, %v1895
        %v1909 = vadd.f32 %v1870, %v1895
        %v1910 = vadd.f32 %v1871, %v1895
        %v1911 = vadd.f32 %v1872, %v1895
        %v1912 = vadd.f32 %v1873, %v1895
        %v1913 = vadd.f32 %v1874, %v1895
        %v1914 = vadd.f32 %v1875, %v1895
        %v1915 = vadd.f32 %v1876, %v1895
        %v1916 = vadd.f32 %v1877, %v1895
        %v1917 = vadd.f32 %v1878, %v1895
        %v1918 = vadd.f32 %v1879, %v1895
        %v1919 = vadd.f32 %v1880, %v1895
        %v1920 = vadd.f32 %v1881, %v1895
        %v1921 = vadd.f32 %v1882, %v1895
        %v1922 = vadd.f32 %v1883, %v1895
        %v1923 = vadd.f32 %v1884, %v1895
        %v1924 = vadd.f32 %v1885, %v1895
        %v1925 = vadd.f32 %v1886, %v1895
        %v1926 = vadd.f32 %v1887, %v1895
        %v1927 = vadd.f32 %v1888, %v1895
        %v1928 = vadd.f32 %v1889, %v1895
        %p1929 = scmp.lt.s32.totalorder %s20, 2
        // Predicated region
        $region61: #{tpu_custom_call.1} parent=43 // pred_check
          %p1930 = pneg %p1929
        $region62: #{tpu_custom_call.1} parent=43 // pred_check_branch
          %1932 = sbr.rel (%p1930) target = $region64
        $region63: #{tpu_custom_call.1} parent=43 // pred_region
          %v1933 = vxor.u32 %v1897, 2147483648
          %v1934 = vxor.u32 %v1898, 2147483648
          %v1935 = vxor.u32 %v1899, 2147483648
          %v1936 = vxor.u32 %v1900, 2147483648
          %v1937 = vxor.u32 %v1901, 2147483648
          %v1938 = vxor.u32 %v1902, 2147483648
          %v1939 = vxor.u32 %v1903, 2147483648
          %v1940 = vxor.u32 %v1904, 2147483648
          %v1941 = vxor.u32 %v1905, 2147483648
          %v1942 = vxor.u32 %v1906, 2147483648
          %v1943 = vxor.u32 %v1907, 2147483648
          %v1944 = vxor.u32 %v1908, 2147483648
          %v1945 = vxor.u32 %v1909, 2147483648
          %v1946 = vxor.u32 %v1910, 2147483648
          %v1947 = vxor.u32 %v1911, 2147483648
          %v1948 = vxor.u32 %v1912, 2147483648
          %v1949 = vxor.u32 %v1913, 2147483648
          %v1950 = vxor.u32 %v1914, 2147483648
          %v1951 = vxor.u32 %v1915, 2147483648
          %v1952 = vxor.u32 %v1916, 2147483648
          %v1953 = vxor.u32 %v1917, 2147483648
          %v1954 = vxor.u32 %v1918, 2147483648
          %v1955 = vxor.u32 %v1919, 2147483648
          %v1956 = vxor.u32 %v1920, 2147483648
          %v1957 = vxor.u32 %v1921, 2147483648
          %v1958 = vxor.u32 %v1922, 2147483648
          %v1959 = vxor.u32 %v1923, 2147483648
          %v1960 = vxor.u32 %v1924, 2147483648
          %v1961 = vxor.u32 %v1925, 2147483648
          %v1962 = vxor.u32 %v1926, 2147483648
          %v1963 = vxor.u32 %v1927, 2147483648
          %v1964 = vxor.u32 %v1928, 2147483648
          %v1965 = vmul.f32 %v1933, 1.442695
          %v1966 = vpow.pop %v1965
          %v1967 = vmul.f32 %v1934, 1.442695
          %v1968 = vpow.pop %v1967
          %v1969 = vmul.f32 %v1935, 1.442695
          %v1970 = vpow.pop %v1969
          %v1971 = vmul.f32 %v1936, 1.442695
          %v1972 = vpow.pop %v1971
          %v1973 = vmul.f32 %v1937, 1.442695
          %v1974 = vpow.pop %v1973
          %v1975 = vmul.f32 %v1938, 1.442695
          %v1976 = vpow.pop %v1975
          %v1977 = vmul.f32 %v1939, 1.442695
          %v1978 = vpow.pop %v1977
          %v1979 = vmul.f32 %v1940, 1.442695
          %v1980 = vpow.pop %v1979
          %v1981 = vmul.f32 %v1941, 1.442695
          %v1982 = vpow.pop %v1981
          %v1983 = vmul.f32 %v1942, 1.442695
          %v1984 = vpow.pop %v1983
          %v1985 = vmul.f32 %v1943, 1.442695
          %v1986 = vpow.pop %v1985
          %v1987 = vmul.f32 %v1944, 1.442695
          %v1988 = vpow.pop %v1987
          %v1989 = vmul.f32 %v1945, 1.442695
          %v1990 = vpow.pop %v1989
          %v1991 = vmul.f32 %v1946, 1.442695
          %v1992 = vpow.pop %v1991
          %v1993 = vmul.f32 %v1947, 1.442695
          %v1994 = vpow.pop %v1993
          %v1995 = vmul.f32 %v1948, 1.442695
          %v1996 = vpow.pop %v1995
          %v1997 = vmul.f32 %v1949, 1.442695
          %v1998 = vpow.pop %v1997
          %v1999 = vmul.f32 %v1950, 1.442695
          %v2000 = vpow.pop %v1999
          %v2001 = vmul.f32 %v1951, 1.442695
          %v2002 = vpow.pop %v2001
          %v2003 = vmul.f32 %v1952, 1.442695
          %v2004 = vpow.pop %v2003
          %v2005 = vmul.f32 %v1953, 1.442695
          %v2006 = vpow.pop %v2005
          %v2007 = vmul.f32 %v1954, 1.442695
          %v2008 = vpow.pop %v2007
          %v2009 = vmul.f32 %v1955, 1.442695
          %v2010 = vpow.pop %v2009
          %v2011 = vmul.f32 %v1956, 1.442695
          %v2012 = vpow.pop %v2011
          %v2013 = vmul.f32 %v1957, 1.442695
          %v2014 = vpow.pop %v2013
          %v2015 = vmul.f32 %v1958, 1.442695
          %v2016 = vpow.pop %v2015
          %v2017 = vmul.f32 %v1959, 1.442695
          %v2018 = vpow.pop %v2017
          %v2019 = vmul.f32 %v1960, 1.442695
          %v2020 = vpow.pop %v2019
          %v2021 = vmul.f32 %v1961, 1.442695
          %v2022 = vpow.pop %v2021
          %v2023 = vmul.f32 %v1962, 1.442695
          %v2024 = vpow.pop %v2023
          %v2025 = vmul.f32 %v1963, 1.442695
          %v2026 = vpow.pop %v2025
          %v2027 = vmul.f32 %v1964, 1.442695
          %v2028 = vpow.pop %v2027
          %v2029 = vadd.f32 %v1966, 1.0
          %v2030 = vadd.f32 %v1968, 1.0
          %v2031 = vadd.f32 %v1970, 1.0
          %v2032 = vadd.f32 %v1972, 1.0
          %v2033 = vadd.f32 %v1974, 1.0
          %v2034 = vadd.f32 %v1976, 1.0
          %v2035 = vadd.f32 %v1978, 1.0
          %v2036 = vadd.f32 %v1980, 1.0
          %v2037 = vadd.f32 %v1982, 1.0
          %v2038 = vadd.f32 %v1984, 1.0
          %v2039 = vadd.f32 %v1986, 1.0
          %v2040 = vadd.f32 %v1988, 1.0
          %v2041 = vadd.f32 %v1990, 1.0
          %v2042 = vadd.f32 %v1992, 1.0
          %v2043 = vadd.f32 %v1994, 1.0
          %v2044 = vadd.f32 %v1996, 1.0
          %v2045 = vadd.f32 %v1998, 1.0
          %v2046 = vadd.f32 %v2000, 1.0
          %v2047 = vadd.f32 %v2002, 1.0
          %v2048 = vadd.f32 %v2004, 1.0
          %v2049 = vadd.f32 %v2006, 1.0
          %v2050 = vadd.f32 %v2008, 1.0
          %v2051 = vadd.f32 %v2010, 1.0
          %v2052 = vadd.f32 %v2012, 1.0
          %v2053 = vadd.f32 %v2014, 1.0
          %v2054 = vadd.f32 %v2016, 1.0
          %v2055 = vadd.f32 %v2018, 1.0
          %v2056 = vadd.f32 %v2020, 1.0
          %v2057 = vadd.f32 %v2022, 1.0
          %v2058 = vadd.f32 %v2024, 1.0
          %v2059 = vadd.f32 %v2026, 1.0
          %v2060 = vadd.f32 %v2028, 1.0
          %v2061 = vrcp.pop %v2029
          %v2062 = vmul.f32 1.0, %v2061
          %v2063 = vrcp.pop %v2030
          %v2064 = vmul.f32 1.0, %v2063
          %v2065 = vrcp.pop %v2031
          %v2066 = vmul.f32 1.0, %v2065
          %v2067 = vrcp.pop %v2032
          %v2068 = vmul.f32 1.0, %v2067
          %v2069 = vrcp.pop %v2033
          %v2070 = vmul.f32 1.0, %v2069
          %v2071 = vrcp.pop %v2034
          %v2072 = vmul.f32 1.0, %v2071
          %v2073 = vrcp.pop %v2035
          %v2074 = vmul.f32 1.0, %v2073
          %v2075 = vrcp.pop %v2036
          %v2076 = vmul.f32 1.0, %v2075
          %v2077 = vrcp.pop %v2037
          %v2078 = vmul.f32 1.0, %v2077
          %v2079 = vrcp.pop %v2038
          %v2080 = vmul.f32 1.0, %v2079
          %v2081 = vrcp.pop %v2039
          %v2082 = vmul.f32 1.0, %v2081
          %v2083 = vrcp.pop %v2040
          %v2084 = vmul.f32 1.0, %v2083
          %v2085 = vrcp.pop %v2041
          %v2086 = vmul.f32 1.0, %v2085
          %v2087 = vrcp.pop %v2042
          %v2088 = vmul.f32 1.0, %v2087
          %v2089 = vrcp.pop %v2043
          %v2090 = vmul.f32 1.0, %v2089
          %v2091 = vrcp.pop %v2044
          %v2092 = vmul.f32 1.0, %v2091
          %v2093 = vrcp.pop %v2045
          %v2094 = vmul.f32 1.0, %v2093
          %v2095 = vrcp.pop %v2046
          %v2096 = vmul.f32 1.0, %v2095
          %v2097 = vrcp.pop %v2047
          %v2098 = vmul.f32 1.0, %v2097
          %v2099 = vrcp.pop %v2048
          %v2100 = vmul.f32 1.0, %v2099
          %v2101 = vrcp.pop %v2049
          %v2102 = vmul.f32 1.0, %v2101
          %v2103 = vrcp.pop %v2050
          %v2104 = vmul.f32 1.0, %v2103
          %v2105 = vrcp.pop %v2051
          %v2106 = vmul.f32 1.0, %v2105
          %v2107 = vrcp.pop %v2052
          %v2108 = vmul.f32 1.0, %v2107
          %v2109 = vrcp.pop %v2053
          %v2110 = vmul.f32 1.0, %v2109
          %v2111 = vrcp.pop %v2054
          %v2112 = vmul.f32 1.0, %v2111
          %v2113 = vrcp.pop %v2055
          %v2114 = vmul.f32 1.0, %v2113
          %v2115 = vrcp.pop %v2056
          %v2116 = vmul.f32 1.0, %v2115
          %v2117 = vrcp.pop %v2057
          %v2118 = vmul.f32 1.0, %v2117
          %v2119 = vrcp.pop %v2058
          %v2120 = vmul.f32 1.0, %v2119
          %v2121 = vrcp.pop %v2059
          %v2122 = vmul.f32 1.0, %v2121
          %v2123 = vrcp.pop %v2060
          %v2124 = vmul.f32 1.0, %v2123
          %v2125 = vmul.f32 %v1897, %v2062
          %v2126 = vmul.f32 %v1898, %v2064
          %v2127 = vmul.f32 %v1899, %v2066
          %v2128 = vmul.f32 %v1900, %v2068
          %v2129 = vmul.f32 %v1901, %v2070
          %v2130 = vmul.f32 %v1902, %v2072
          %v2131 = vmul.f32 %v1903, %v2074
          %v2132 = vmul.f32 %v1904, %v2076
          %v2133 = vmul.f32 %v1905, %v2078
          %v2134 = vmul.f32 %v1906, %v2080
          %v2135 = vmul.f32 %v1907, %v2082
          %v2136 = vmul.f32 %v1908, %v2084
          %v2137 = vmul.f32 %v1909, %v2086
          %v2138 = vmul.f32 %v1910, %v2088
          %v2139 = vmul.f32 %v1911, %v2090
          %v2140 = vmul.f32 %v1912, %v2092
          %v2141 = vmul.f32 %v1913, %v2094
          %v2142 = vmul.f32 %v1914, %v2096
          %v2143 = vmul.f32 %v1915, %v2098
          %v2144 = vmul.f32 %v1916, %v2100
          %v2145 = vmul.f32 %v1917, %v2102
          %v2146 = vmul.f32 %v1918, %v2104
          %v2147 = vmul.f32 %v1919, %v2106
          %v2148 = vmul.f32 %v1920, %v2108
          %v2149 = vmul.f32 %v1921, %v2110
          %v2150 = vmul.f32 %v1922, %v2112
          %v2151 = vmul.f32 %v1923, %v2114
          %v2152 = vmul.f32 %v1924, %v2116
          %v2153 = vmul.f32 %v1925, %v2118
          %v2154 = vmul.f32 %v1926, %v2120
          %v2155 = vmul.f32 %v1927, %v2122
          %v2156 = vmul.f32 %v1928, %v2124
          %v2157 = vpack.c.bf16 %v2126, %v2125
          %v2158 = vpack.c.bf16 %v2128, %v2127
          %v2159 = vpack.c.bf16 %v2130, %v2129
          %v2160 = vpack.c.bf16 %v2132, %v2131
          %v2161 = vpack.c.bf16 %v2134, %v2133
          %v2162 = vpack.c.bf16 %v2136, %v2135
          %v2163 = vpack.c.bf16 %v2138, %v2137
          %v2164 = vpack.c.bf16 %v2140, %v2139
          %v2165 = vpack.c.bf16 %v2142, %v2141
          %v2166 = vpack.c.bf16 %v2144, %v2143
          %v2167 = vpack.c.bf16 %v2146, %v2145
          %v2168 = vpack.c.bf16 %v2148, %v2147
          %v2169 = vpack.c.bf16 %v2150, %v2149
          %v2170 = vpack.c.bf16 %v2152, %v2151
          %v2171 = vpack.c.bf16 %v2154, %v2153
          %v2172 = vpack.c.bf16 %v2156, %v2155
          %2173 = vst [vmem:[#allocation2] sm:$0xff] %v2157
          %2174 = vst [vmem:[#allocation2 + $0x8] sm:$0xff] %v2158
          %2175 = vst [vmem:[#allocation2 + $0x10] sm:$0xff] %v2159
          %2176 = vst [vmem:[#allocation2 + $0x18] sm:$0xff] %v2160
          %2177 = vst [vmem:[#allocation2 + $0x20] sm:$0xff] %v2161
          %2178 = vst [vmem:[#allocation2 + $0x28] sm:$0xff] %v2162
          %2179 = vst [vmem:[#allocation2 + $0x30] sm:$0xff] %v2163
          %2180 = vst [vmem:[#allocation2 + $0x38] sm:$0xff] %v2164
          %2181 = vst [vmem:[#allocation2 + $0x40] sm:$0xff] %v2165
          %2182 = vst [vmem:[#allocation2 + $0x48] sm:$0xff] %v2166
          %2183 = vst [vmem:[#allocation2 + $0x50] sm:$0xff] %v2167
          %2184 = vst [vmem:[#allocation2 + $0x58] sm:$0xff] %v2168
          %2185 = vst [vmem:[#allocation2 + $0x60] sm:$0xff] %v2169
          %2186 = vst [vmem:[#allocation2 + $0x68] sm:$0xff] %v2170
          %2187 = vst [vmem:[#allocation2 + $0x70] sm:$0xff] %v2171
          %2188 = vst [vmem:[#allocation2 + $0x78] sm:$0xff] %v2172
        $region64: #{tpu_custom_call.1} parent=43 // pred_fallthru
          _
        %p2189 = scmp.eq.s32.totalorder %s20, 2
        // Predicated region
        $region65: #{tpu_custom_call.1} parent=43 // pred_check
          %p2190 = pneg %p2189
        $region66: #{tpu_custom_call.1} parent=43 // pred_check_branch
          %2192 = sbr.rel (%p2190) target = $region68
        $region67: #{tpu_custom_call.1} parent=43 // pred_region
          %v2193 = vmax.f32 %v1897, %v1898
          %v2194 = vmax.f32 %v2193, %v1899
          %v2195 = vmax.f32 %v2194, %v1900
          %v2196 = vrot.slane %v2195, 4
          %v2197 = vmax.f32 %v2195, %v2196
          %v2198 = vrot.slane %v2197, 2
          %v2199 = vmax.f32 %v2197, %v2198
          %v2200 = vrot.slane %v2199, 1
          %v2201 = vmax.f32 %v2199, %v2200
          %v2202 = vmax.f32 %v1901, %v1902
          %v2203 = vmax.f32 %v2202, %v1903
          %v2204 = vmax.f32 %v2203, %v1904
          %v2205 = vrot.slane %v2204, 4
          %v2206 = vmax.f32 %v2204, %v2205
          %v2207 = vrot.slane %v2206, 2
          %v2208 = vmax.f32 %v2206, %v2207
          %v2209 = vrot.slane %v2208, 1
          %v2210 = vmax.f32 %v2208, %v2209
          %v2211 = vmax.f32 %v1905, %v1906
          %v2212 = vmax.f32 %v2211, %v1907
          %v2213 = vmax.f32 %v2212, %v1908
          %v2214 = vrot.slane %v2213, 4
          %v2215 = vmax.f32 %v2213, %v2214
          %v2216 = vrot.slane %v2215, 2
          %v2217 = vmax.f32 %v2215, %v2216
          %v2218 = vrot.slane %v2217, 1
          %v2219 = vmax.f32 %v2217, %v2218
          %v2220 = vmax.f32 %v1909, %v1910
          %v2221 = vmax.f32 %v2220, %v1911
          %v2222 = vmax.f32 %v2221, %v1912
          %v2223 = vrot.slane %v2222, 4
          %v2224 = vmax.f32 %v2222, %v2223
          %v2225 = vrot.slane %v2224, 2
          %v2226 = vmax.f32 %v2224, %v2225
          %v2227 = vrot.slane %v2226, 1
          %v2228 = vmax.f32 %v2226, %v2227
          %v2229 = vmax.f32 %v1913, %v1914
          %v2230 = vmax.f32 %v2229, %v1915
          %v2231 = vmax.f32 %v2230, %v1916
          %v2232 = vrot.slane %v2231, 4
          %v2233 = vmax.f32 %v2231, %v2232
          %v2234 = vrot.slane %v2233, 2
          %v2235 = vmax.f32 %v2233, %v2234
          %v2236 = vrot.slane %v2235, 1
          %v2237 = vmax.f32 %v2235, %v2236
          %v2238 = vmax.f32 %v1917, %v1918
          %v2239 = vmax.f32 %v2238, %v1919
          %v2240 = vmax.f32 %v2239, %v1920
          %v2241 = vrot.slane %v2240, 4
          %v2242 = vmax.f32 %v2240, %v2241
          %v2243 = vrot.slane %v2242, 2
          %v2244 = vmax.f32 %v2242, %v2243
          %v2245 = vrot.slane %v2244, 1
          %v2246 = vmax.f32 %v2244, %v2245
          %v2247 = vmax.f32 %v1921, %v1922
          %v2248 = vmax.f32 %v2247, %v1923
          %v2249 = vmax.f32 %v2248, %v1924
          %v2250 = vrot.slane %v2249, 4
          %v2251 = vmax.f32 %v2249, %v2250
          %v2252 = vrot.slane %v2251, 2
          %v2253 = vmax.f32 %v2251, %v2252
          %v2254 = vrot.slane %v2253, 1
          %v2255 = vmax.f32 %v2253, %v2254
          %v2256 = vmax.f32 %v1925, %v1926
          %v2257 = vmax.f32 %v2256, %v1927
          %v2258 = vmax.f32 %v2257, %v1928
          %v2259 = vrot.slane %v2258, 4
          %v2260 = vmax.f32 %v2258, %v2259
          %v2261 = vrot.slane %v2260, 2
          %v2262 = vmax.f32 %v2260, %v2261
          %v2263 = vrot.slane %v2262, 1
          %v2264 = vmax.f32 %v2262, %v2263
          %v2265 = vld [vmem:[%s5] sm:$0xff]
          %v2266 = vld [vmem:[%s5 + $0x8] sm:$0xff]
          %2267 = vmatprep.subr.mxu0 0.0
          %2268 = vmatpush1.msra.mxu0 %v1897
          %2269 = vmatprep.subr.mxu0 0.0
          %2270 = vmatpush1.msra.mxu0 %v1898
          %2271 = vmatprep.subr.mxu0 0.0
          %2272 = vmatpush1.msra.mxu0 %v1899
          %2273 = vmatprep.subr.mxu0 0.0
          %2274 = vmatpush1.msra.mxu0 %v1900
          %2275 = vmatprep.subr.mxu0 0.0
          %2276 = vmatpush1.msra.mxu0 %v1901
          %2277 = vmatprep.subr.mxu0 0.0
          %2278 = vmatpush1.msra.mxu0 %v1902
          %2279 = vmatprep.subr.mxu0 0.0
          %2280 = vmatpush1.msra.mxu0 %v1903
          %2281 = vmatprep.subr.mxu0 0.0
          %2282 = vmatpush1.msra.mxu0 %v1904
          %2283 = vmatprep.subr.mxu0 0.0
          %2284 = vmatpush1.msra.mxu0 %v1905
          %2285 = vmatprep.subr.mxu0 0.0
          %2286 = vmatpush1.msra.mxu0 %v1906
          %2287 = vmatprep.subr.mxu0 0.0
          %2288 = vmatpush1.msra.mxu0 %v1907
          %2289 = vmatprep.subr.mxu0 0.0
          %2290 = vmatpush1.msra.mxu0 %v1908
          %2291 = vmatprep.subr.mxu0 0.0
          %2292 = vmatpush1.msra.mxu0 %v1909
          %2293 = vmatprep.subr.mxu0 0.0
          %2294 = vmatpush1.msra.mxu0 %v1910
          %2295 = vmatprep.subr.mxu0 0.0
          %2296 = vmatpush1.msra.mxu0 %v1911
          %2297 = vmatprep.subr.mxu0 0.0
          %2298 = vmatpush1.msra.mxu0 %v1912
          %2299 = vmatprep.subr.mxu0 0.0
          %2300 = vmatpush1.msra.mxu0 %v1913
          %2301 = vmatprep.subr.mxu0 0.0
          %2302 = vmatpush1.msra.mxu0 %v1914
          %2303 = vmatprep.subr.mxu0 0.0
          %2304 = vmatpush1.msra.mxu0 %v1915
          %2305 = vmatprep.subr.mxu0 0.0
          %2306 = vmatpush1.msra.mxu0 %v1916
          %2307 = vmatprep.subr.mxu0 0.0
          %2308 = vmatpush1.msra.mxu0 %v1917
          %2309 = vmatprep.subr.mxu0 0.0
          %2310 = vmatpush1.msra.mxu0 %v1918
          %2311 = vmatprep.subr.mxu0 0.0
          %2312 = vmatpush1.msra.mxu0 %v1919
          %2313 = vmatprep.subr.mxu0 0.0
          %2314 = vmatpush1.msra.mxu0 %v1920
          %2315 = vmatprep.subr.mxu0 0.0
          %2316 = vmatpush1.msra.mxu0 %v1921
          %2317 = vmatprep.subr.mxu0 0.0
          %2318 = vmatpush1.msra.mxu0 %v1922
          %2319 = vmatprep.subr.mxu0 0.0
          %2320 = vmatpush1.msra.mxu0 %v1923
          %2321 = vmatprep.subr.mxu0 0.0
          %2322 = vmatpush1.msra.mxu0 %v1924
          %2323 = vmatprep.subr.mxu0 0.0
          %2324 = vmatpush1.msra.mxu0 %v1925
          %2325 = vmatprep.subr.mxu0 0.0
          %2326 = vmatpush1.msra.mxu0 %v1926
          %2327 = vmatprep.subr.mxu0 0.0
          %2328 = vmatpush1.msra.mxu0 %v1927
          %2329 = vmatprep.subr.mxu0 0.0
          %2330 = vmatpush1.msra.mxu0 %v1928
          %2331 = vmatprep.mubr.f32.mxu0 %v2266
          %2332 = vmatmul.mubr.f32.gmra.mrb[0].mxu0 %v2265
          %v2333 = vpop.f32.mrb[0].mxu0
          %v2334 = vadd.f32 0.0, %v2333
          %v2335 = vpop.f32.mrb[0].mxu0
          %2336 = vdwg.mxu0
          %vm2345 = vcmask 1041409
          %v2346 = vsel %vm2345, %v2210, %v2201
          %vm2347 = vcmask 1042434
          %v2348 = vsel %vm2347, %v2219, %v2346
          %vm2349 = vcmask 1043459
          %v2350 = vsel %vm2349, %v2228, %v2348
          %vm2351 = vcmask 1044484
          %v2352 = vsel %vm2351, %v2237, %v2350
          %vm2353 = vcmask 1045509
          %v2354 = vsel %vm2353, %v2246, %v2352
          %vm2355 = vcmask 1046534
          %v2356 = vsel %vm2355, %v2255, %v2354
          %vm2357 = vcmask 1047559
          %v2358 = vsel %vm2357, %v2264, %v2356
          %2361 = vrot.lane.b32.xlu0 %v2334, 4
          %v2362 = vpop.permute.xlu0 %2361
          %vm2364 = vcmask 31744
          %v2365 = vsel %vm2364, %v2358, %v2362
          %vm2366 = vcmask 64512
          %v2367 = vsel %vm2366, %v2365, -inf
          %2368 = vmax.xlane.f32.xlu0 %v2367
          %v2369 = vpop.xlane.xlu0 %2368
          %v2370 = vsub.f32 %v2365, %v2369
          %v2371 = vmul.f32 %v2370, 1.442695
          %v2372 = vpow.pop %v2371
          %v2373 = vsel %vm2366, %v2372, 0.0
          %2374 = vadd.xlane.f32.xlu0 %v2373
          %v2375 = vpop.xlane.xlu0 %2374
          %v2376 = vlog2.pop %v2375
          %v2377 = vmul.f32 %v2376, 0.6931472
          %v2378 = vsub.f32 %v2370, %v2377
          %2379 = vst.msk [vmem:[#allocation9] sm:$0xff] %vm2366, %v2378
        $region68: #{tpu_custom_call.1} parent=43 // pred_fallthru
          _
        // Predicated region
        $region69: #{tpu_custom_call.1} parent=43 // pred_check
          %p2380 = pneg %p174
        $region70: #{tpu_custom_call.1} parent=43 // pred_check_branch
          %2382 = sbr.rel (%p2380) target = $region72
        $region71: #{tpu_custom_call.1} parent=43 // pred_region
          %s2384 = ssub.s32 128, 128
          %2385 = vsyncadd [#allocation5], %s2384
          %s2387 = sshll.u32 [#allocation9], 4
          %s2388 = int_to_ptr.vmem [resolvable:$true] %s2387
          %2390 = dma.vmem_to_hbm [thread:$0]  %s2388, 128, %s6, [#allocation5]
        $region72: #{tpu_custom_call.1} parent=43 // pred_fallthru
          _
        // Predicated region
        $region73: #{tpu_custom_call.1} parent=43 // pred_check
          %p2391 = pneg %p174
        $region74: #{tpu_custom_call.1} parent=43 // pred_check_branch
          %2393 = sbr.rel (%p2391) target = $region76
        $region75: #{tpu_custom_call.1} parent=43 // pred_region
          %2394 = dma.done [#allocation5], 128
        $region76: #{tpu_custom_call.1} parent=43 // pred_fallthru
          _
      $region44: #{tpu_custom_call.1} parent=5 // pred_fallthru
        _
      %p2395 = scmp.le.s32.totalorder 2, %s15
      // Predicated region
      $region77: #{tpu_custom_call.1} parent=5 // pred_check
        %p2396 = pneg %p2395
      $region78: #{tpu_custom_call.1} parent=5 // pred_check_branch
        %2398 = sbr.rel (%p2396) target = $region80
      $region79: #{tpu_custom_call.1} parent=5 // pred_region
        %s2399 = ssub.s32 %s15, 2
      $region80: #{tpu_custom_call.1} parent=5 // pred_fallthru
        _
    $region6: #{tpu_custom_call.1} parent=1 // loop_footer
      %s19 = sadd.s32 1, %s15
    $region7: #{tpu_custom_call.1} parent=1 // loop_footer_branch
      %14 = sbr.rel target = $region3
    $region8: #{tpu_custom_call.1} parent=1 // loop_exit
      _
    %2400 = vsyncpa [#allocation4], 1
    %s2401 = scalar_lea.sflag [#allocation4], 1
    %2402 = vsyncpa %s2401, 1
    %2403 = vsyncpa [#allocation7], 1
    %2404 = vsyncpa [#allocation5], 1
    %s2405 = scalar_lea.sflag [#allocation5], 1
    %2406 = vsyncpa %s2405, 1

</llo_original>
